<compile_context>
chip_gen: v5e
topology: v5e:2x2
jax: 0.10.0
libtpu: 0.0.40
codegen_flags: <defaults>
</compile_context>

<pallas_src>
import functools

import jax
import jax.numpy as jnp
from jax import lax
from jax.experimental import pallas as pl
from jax.experimental.pallas import tpu as pltpu


def _transformer_block_kernel(
    x_ref,             # (TQ, E)   query tile of x (f32)
    wq_ref,            # (E, E)    bf16  (heads stacked along output axis)
    wkv_ref,           # (E, 2E)   bf16  [wk | wv]
    wo_ref, bo_ref,    # (E, E) bf16, (1, E) f32
    w1_ref, b1_ref,    # (E, 4E) bf16, (1, 4E) f32
    w2_ref, b2_ref,    # (4E, E) bf16, (1, E) f32
    o_ref,             # (TQ, E)   output tile
    kv_ref,            # (num_q, TQ, 2E) bf16 persistent K/V scratch (qi carry)
    ctx_ref,           # (TQ, E)   bf16 attention-context scratch
    *, n_heads, head_size, q_block,
):
    f32 = jnp.float32
    bf16 = jnp.bfloat16
    E = n_heads * head_size
    TQ = q_block
    qi = pl.program_id(1)

    x = x_ref[...].astype(f32)          # (TQ, E), kept f32 for the residual
    x_bf = x.astype(bf16)

    scale = jnp.float32(head_size ** -0.5)
    neg = jnp.float32(-1e30)

    # Q projection (softmax scale folded in once per tile) and the NEW K/V
    # rows for this tile.  K/V for earlier tiles were written by previous
    # grid steps of the same batch element (qi axis is "arbitrary").
    q = jnp.dot(x_bf, wq_ref[...], preferred_element_type=f32) * scale   # (TQ, E)
    kv_new = jnp.dot(x_bf, wkv_ref[...], preferred_element_type=f32)     # (TQ, 2E)
    kv_ref[qi] = kv_new.astype(bf16)

    # Causal mask of the diagonal key block (global query = qi*TQ + r,
    # global key = j*TQ + c; for j == qi the mask reduces to c <= r).
    row = lax.broadcasted_iota(jnp.int32, (TQ, TQ), 0)
    col = lax.broadcasted_iota(jnp.int32, (TQ, TQ), 1)
    causal_diag = col <= row

    # Per-head attention: flash-style online softmax over key blocks 0..qi
    # only (causality => no work on key blocks past the diagonal).
    for h in range(n_heads):
        lo = h * head_size
        qh = q[:, lo:lo + head_size].astype(bf16)                        # (TQ, hs)

        def kv_step(j, carry, qh=qh, lo=lo):
            m, l, acc = carry
            kh = kv_ref[j, :, lo:lo + head_size]                         # (TQ, hs) bf16
            vh = kv_ref[j, :, E + lo:E + lo + head_size]                 # (TQ, hs) bf16
            s = jnp.einsum("qd,kd->qk", qh, kh,
                           preferred_element_type=f32)                    # (TQ, TQ)
            mask = (j < qi) | causal_diag
            s = jnp.where(mask, s, neg)
            m_new = jnp.maximum(m, jnp.max(s, axis=-1, keepdims=True))
            alpha = jnp.exp(m - m_new)
            p = jnp.exp(s - m_new)
            l_new = alpha * l + jnp.sum(p, axis=-1, keepdims=True)
            acc_new = alpha * acc + jnp.dot(p.astype(bf16), vh,
                                            preferred_element_type=f32)
            return m_new, l_new, acc_new

        m0 = jnp.full((TQ, 1), -jnp.inf, f32)
        l0 = jnp.zeros((TQ, 1), f32)
        a0 = jnp.zeros((TQ, head_size), f32)
        m, l, acc = lax.fori_loop(0, qi + 1, kv_step, (m0, l0, a0))

        ctx = acc * pl.reciprocal(l, approx=True)                        # (TQ, hs)
        ctx_ref[:, lo:lo + head_size] = ctx.astype(bf16)

    # Output projection at full contraction depth E (single MXU pass).
    sa = jnp.dot(ctx_ref[...], wo_ref[...], preferred_element_type=f32) + bo_ref[...]

    # Residual 1
    x1 = x + sa                                                          # f32

    # FeedForwardProjection: Linear(E, 4E) -> ReLU -> Linear(4E, E).
    h1 = jnp.dot(x1.astype(bf16), w1_ref[...], preferred_element_type=f32) + b1_ref[...]
    h1 = jnp.maximum(h1, 0.0)
    ff = jnp.dot(h1.astype(bf16), w2_ref[...], preferred_element_type=f32) + b2_ref[...]

    # Residual 2
    o_ref[...] = (x1 + ff).astype(o_ref.dtype)


def _vmem_limit_bytes(E, q_block, num_q):
    """Chip-aware scoped-VMEM limit: rough estimate capped below physical."""
    w_bytes = 12 * E * E * 2                       # bf16 weights, one copy
    b_bytes = 6 * E * 4                            # f32 biases
    io_bytes = 2 * q_block * E * 4                 # x tile in + out tile
    pipelined = 2 * (w_bytes + b_bytes + io_bytes)  # pipeline double-buffering
    scratch = num_q * q_block * 2 * E * 2 + q_block * E * 2
    live = (q_block * E * 4 + q_block * 2 * E * 4 + 4 * q_block * q_block * 4
            + q_block * 4 * E * 4 + 3 * q_block * E * 4)
    est = pipelined + scratch + live
    try:
        cap = int(getattr(pltpu.get_tpu_info(), "vmem_capacity_bytes",
                          64 * 1024 * 1024))
    except Exception:
        cap = 64 * 1024 * 1024                     # safe on all generations
    return int(min(max(est * 5 // 4, 32 * 1024 * 1024), (cap * 85) // 100))


def transformer_block(x, params, *, n_heads, q_block=None):
    """x: (B, T, E) float32. params: dict of weights (see init_params)."""
    B, T, E = x.shape
    head_size = E // n_heads

    if q_block is None:
        # TODO(synk): sweep per chip (v6e has headroom for 512; v5e 128-256).
        q_block = min(T, 256)
    q_block = min(q_block, T)
    num_q = pl.cdiv(T, q_block)
    T_pad = num_q * q_block
    if T_pad != T:
        # Pad the sequence so every query tile is full-sized.  Padded keys
        # have global index >= T and are never attended by real causal
        # queries; padded output rows are sliced off below.
        x_in = jnp.pad(x, ((0, 0), (0, T_pad - T), (0, 0)))
    else:
        x_in = x

    kernel = functools.partial(
        _transformer_block_kernel,
        n_heads=n_heads, head_size=head_size, q_block=q_block,
    )

    def winv(shape):
        # Grid-invariant (fully resident) weight spec.
        return pl.BlockSpec(shape, lambda b, qi: (0,) * len(shape))

    in_specs = [
        pl.BlockSpec((None, q_block, E), lambda b, qi: (b, qi, 0)),   # x query tile
        winv((E, E)),                                                 # wq  (bf16)
        winv((E, 2 * E)),                                             # wkv (bf16)
        winv((E, E)),                                                 # wo  (bf16)
        winv((1, E)),                                                 # bo  (f32)
        winv((E, 4 * E)),                                             # w1  (bf16)
        winv((1, 4 * E)),                                             # b1  (f32)
        winv((4 * E, E)),                                             # w2  (bf16)
        winv((1, E)),                                                 # b2  (f32)
    ]
    out_spec = pl.BlockSpec((None, q_block, E), lambda b, qi: (b, qi, 0))

    scratch_shapes = [
        pltpu.VMEM((num_q, q_block, 2 * E), jnp.bfloat16),   # persistent K/V
        pltpu.VMEM((q_block, E), jnp.bfloat16),              # per-tile contexts
    ]

    cost = pl.CostEstimate(
        flops=int(B * (24 * T_pad * E * E + 2 * T_pad * T_pad * E)),
        transcendentals=int(B * n_heads * T_pad * T_pad // 2),
        bytes_accessed=int(2 * B * T_pad * E * 4 + 24 * E * E + 6 * E * 4),
    )

    out = pl.pallas_call(
        kernel,
        out_shape=jax.ShapeDtypeStruct((B, T_pad, E), x.dtype),
        grid=(B, num_q),
        in_specs=in_specs,
        out_specs=out_spec,
        scratch_shapes=scratch_shapes,
        compiler_params=pltpu.CompilerParams(
            # qi carries the K/V scratch between steps -> must be "arbitrary".
            dimension_semantics=("parallel", "arbitrary"),
            vmem_limit_bytes=_vmem_limit_bytes(E, q_block, num_q),
        ),
        cost_estimate=cost,
    )(
        x_in,
        params["wq"], params["wkv"],
        params["wo"], params["bo"],
        params["w1"], params["b1"],
        params["w2"], params["b2"],
    )
    if T_pad != T:
        out = out[:, :T, :]
    return out


def init_params(key, n_embed):
    """Deterministic synthetic parameters (shapes follow the torch module).

    Matmul weights are stored in bfloat16 (MXU-native); biases stay f32.
    """
    E = n_embed
    keys = jax.random.split(key, 10)
    s = 0.02
    wq = s * jax.random.normal(keys[0], (E, E), jnp.float32)
    wk = s * jax.random.normal(keys[1], (E, E), jnp.float32)
    wv = s * jax.random.normal(keys[2], (E, E), jnp.float32)
    wo = s * jax.random.normal(keys[3], (E, E), jnp.float32)
    w1 = s * jax.random.normal(keys[5], (E, 4 * E), jnp.float32)
    w2 = s * jax.random.normal(keys[7], (4 * E, E), jnp.float32)
    return {
        "wq": wq.astype(jnp.bfloat16),
        "wkv": jnp.concatenate([wk, wv], axis=1).astype(jnp.bfloat16),   # (E, 2E)
        "wo": wo.astype(jnp.bfloat16),
        "bo": s * jax.random.normal(keys[4], (1, E), jnp.float32),
        "w1": w1.astype(jnp.bfloat16),
        "b1": s * jax.random.normal(keys[6], (1, 4 * E), jnp.float32),
        "w2": w2.astype(jnp.bfloat16),
        "b2": s * jax.random.normal(keys[8], (1, E), jnp.float32),
    }


def transformer_block_ref(x, params, *, n_heads):
    """Pure-JAX f32 reference mirroring the PyTorch forward (same weights)."""
    B, T, E = x.shape
    hs = E // n_heads
    wq = params["wq"].astype(jnp.float32)
    wkv = params["wkv"].astype(jnp.float32)
    wk, wv = wkv[:, :E], wkv[:, E:]
    wo = params["wo"].astype(jnp.float32)
    w1 = params["w1"].astype(jnp.float32)
    w2 = params["w2"].astype(jnp.float32)

    q = x @ wq
    k = x @ wk
    v = x @ wv
    q = q.reshape(B, T, n_heads, hs).transpose(0, 2, 1, 3)
    k = k.reshape(B, T, n_heads, hs).transpose(0, 2, 1, 3)
    v = v.reshape(B, T, n_heads, hs).transpose(0, 2, 1, 3)
    att = jnp.einsum("bhqd,bhkd->bhqk", q, k) * (hs ** -0.5)
    mask = jnp.tril(jnp.ones((T, T), bool))
    att = jnp.where(mask[None, None], att, -jnp.inf)
    att = jax.nn.softmax(att, axis=-1)
    out = jnp.einsum("bhqk,bhkd->bhqd", att, v)
    out = out.transpose(0, 2, 1, 3).reshape(B, T, E)
    sa = out @ wo + params["bo"]
    x1 = x + sa
    h1 = jnp.maximum(x1 @ w1 + params["b1"], 0.0)
    ff = h1 @ w2 + params["b2"]
    return x1 + ff


if __name__ == "__main__":
    key = jax.random.PRNGKey(0)

    # Config 1 (module-consistent small shape): B=2, T=8, n_embed=32, n_heads=4.
    B, T, E, H = 2, 8, 32, 4
    kx, kp = jax.random.split(key)
    x = jax.random.normal(kx, (B, T, E), jnp.float32)
    params = init_params(kp, E)

    out = transformer_block(x, params, n_heads=H)
    out = jax.block_until_ready(out)
    ref = transformer_block_ref(x, params, n_heads=H)
    assert out.shape == (B, T, E)
    # Tolerance covers bf16 operand casts (f32 accumulation), the online
    # softmax, and the approximate softmax reciprocal.
    assert jnp.allclose(out, ref, atol=2e-2, rtol=2e-2), "mismatch vs JAX reference"

    # Config 2: exercises the multi-tile grid (num_q > 1), the persistent K/V
    # carry across qi steps, and the causal key-block bounding.
    B2, T2 = 2, 16
    kx2, _ = jax.random.split(kx)
    x2 = jax.random.normal(kx2, (B2, T2, E), jnp.float32)
    out2 = jax.block_until_ready(transformer_block(x2, params, n_heads=H, q_block=8))
    ref2 = transformer_block_ref(x2, params, n_heads=H)
    assert out2.shape == (B2, T2, E)
    assert jnp.allclose(out2, ref2, atol=2e-2, rtol=2e-2), "mismatch (multi-tile)"

    print("KERNEL_OK")
</pallas_src>

<mosaic_0001>
module attributes {stable_mosaic.version = 11 : i64} {
  func.func @_transformer_block_kernel(%arg0: i32, %arg1: i32, %arg2: memref<1x8x32xf32, #tpu.memory_space<vmem>>, %arg3: memref<32x32xbf16, #tpu.memory_space<vmem>>, %arg4: memref<32x64xbf16, #tpu.memory_space<vmem>>, %arg5: memref<32x32xbf16, #tpu.memory_space<vmem>>, %arg6: memref<1x32xf32, #tpu.memory_space<vmem>>, %arg7: memref<32x128xbf16, #tpu.memory_space<vmem>>, %arg8: memref<1x128xf32, #tpu.memory_space<vmem>>, %arg9: memref<128x32xbf16, #tpu.memory_space<vmem>>, %arg10: memref<1x32xf32, #tpu.memory_space<vmem>>, %arg11: memref<1x8x32xf32, #tpu.memory_space<vmem>>, %arg12: memref<1x8x64xbf16, #tpu.memory_space<vmem>>, %arg13: memref<8x32xbf16, #tpu.memory_space<vmem>>) attributes {dimension_semantics = [#tpu.dimension_semantics<parallel>, #tpu.dimension_semantics<arbitrary>], iteration_bounds = array<i64: 2, 1>, scalar_prefetch = 0 : i64, scratch_operands = 2 : i64, tpu.core_type = #tpu.core_type<tc>, window_params = [{transform_indices = @transform_0, window_bounds = array<i64: 1, 8, 32>}, {pipeline_mode = #tpu.pipeline_mode<synchronous>, transform_indices = @transform_1, window_bounds = array<i64: 32, 32>}, {pipeline_mode = #tpu.pipeline_mode<synchronous>, transform_indices = @transform_2, window_bounds = array<i64: 32, 64>}, {pipeline_mode = #tpu.pipeline_mode<synchronous>, transform_indices = @transform_3, window_bounds = array<i64: 32, 32>}, {pipeline_mode = #tpu.pipeline_mode<synchronous>, transform_indices = @transform_4, window_bounds = array<i64: 1, 32>}, {pipeline_mode = #tpu.pipeline_mode<synchronous>, transform_indices = @transform_5, window_bounds = array<i64: 32, 128>}, {pipeline_mode = #tpu.pipeline_mode<synchronous>, transform_indices = @transform_6, window_bounds = array<i64: 1, 128>}, {pipeline_mode = #tpu.pipeline_mode<synchronous>, transform_indices = @transform_7, window_bounds = array<i64: 128, 32>}, {pipeline_mode = #tpu.pipeline_mode<synchronous>, transform_indices = @transform_8, window_bounds = array<i64: 1, 32>}, {transform_indices = @transform_9, window_bounds = array<i64: 1, 8, 32>}]} {
    %c0 = arith.constant 0 : index
    %c0_0 = arith.constant 0 : index
    %c0_1 = arith.constant 0 : index
    %0 = vector.load %arg2[%c0, %c0_0, %c0_1] : memref<1x8x32xf32, #tpu.memory_space<vmem>>, vector<1x8x32xf32>
    %1 = vector.shape_cast %0 : vector<1x8x32xf32> to vector<8x32xf32>
    %2 = arith.truncf %1 : vector<8x32xf32> to vector<8x32xbf16>
    %c0_2 = arith.constant 0 : index
    %c0_3 = arith.constant 0 : index
    %3 = vector.load %arg3[%c0_2, %c0_3] : memref<32x32xbf16, #tpu.memory_space<vmem>>, vector<32x32xbf16>
    %cst = arith.constant dense<0.000000e+00> : vector<8x32xf32>
    %4 = tpu.matmul %2, %3, %cst {dimension_numbers = #tpu.dot_dimension_numbers<[1], [0], [0], [1], [0, 0, 1, 1], [], []>} : vector<8x32xbf16>, vector<32x32xbf16>, vector<8x32xf32> -> vector<8x32xf32>
    %cst_4 = arith.constant 0.353553385 : f32
    %5 = vector.broadcast %cst_4 : f32 to vector<8x32xf32>
    %6 = arith.mulf %4, %5 : vector<8x32xf32>
    %c0_5 = arith.constant 0 : index
    %c0_6 = arith.constant 0 : index
    %7 = vector.load %arg4[%c0_5, %c0_6] : memref<32x64xbf16, #tpu.memory_space<vmem>>, vector<32x64xbf16>
    %cst_7 = arith.constant dense<0.000000e+00> : vector<8x64xf32>
    %8 = tpu.matmul %2, %7, %cst_7 {dimension_numbers = #tpu.dot_dimension_numbers<[1], [0], [0], [1], [0, 0, 1, 1], [], []>} : vector<8x32xbf16>, vector<32x64xbf16>, vector<8x64xf32> -> vector<8x64xf32>
    %9 = arith.truncf %8 : vector<8x64xf32> to vector<8x64xbf16>
    %10 = arith.index_cast %arg1 : i32 to index
    %c0_8 = arith.constant 0 : index
    %c0_9 = arith.constant 0 : index
    %11 = vector.load %arg12[%10, %c0_8, %c0_9] : memref<1x8x64xbf16, #tpu.memory_space<vmem>>, vector<1x8x64xbf16>
    %12 = vector.shape_cast %11 : vector<1x8x64xbf16> to vector<8x64xbf16>
    %13 = vector.shape_cast %9 : vector<8x64xbf16> to vector<1x8x64xbf16>
    tpu.vector_store %arg12[%10, %c0_8, %c0_9], %13 {strides = array<i32>} : memref<1x8x64xbf16, #tpu.memory_space<vmem>>, vector<1x8x64xbf16>,
    %14 = tpu.iota {dimensions = array<i32: 0>} : vector<8x8xi32>
    %15 = tpu.iota {dimensions = array<i32: 1>} : vector<8x8xi32>
    %16 = arith.cmpi sle, %15, %14 : vector<8x8xi32>
    %17 = vector.extract_strided_slice %6 {offsets = [0, 0], sizes = [8, 8], strides = [1, 1]} : vector<8x32xf32> to vector<8x8xf32>
    %18 = arith.truncf %17 : vector<8x8xf32> to vector<8x8xbf16>
    %cst_10 = arith.constant 0xFF800000 : f32
    %19 = vector.broadcast %cst_10 : f32 to vector<8x1xf32>
    %cst_11 = arith.constant 0.000000e+00 : f32
    %20 = vector.broadcast %cst_11 : f32 to vector<8x1xf32>
    %cst_12 = arith.constant 0.000000e+00 : f32
    %21 = vector.broadcast %cst_12 : f32 to vector<8x8xf32>
    %c1_i32 = arith.constant 1 : i32
    %22 = arith.addi %arg1, %c1_i32 : i32
    %cst_13 = arith.constant -1.000000e+30 : f32
    %c0_i32 = arith.constant 0 : i32
    %23 = arith.subi %22, %c0_i32 : i32
    %24 = arith.addi %c0_i32, %23 : i32
    %c1_i32_14 = arith.constant 1 : i32
    %25:3 = scf.for %arg14 = %c0_i32 to %24 step %c1_i32_14 iter_args(%arg15 = %19, %arg16 = %20, %arg17 = %21) -> (vector<8x1xf32>, vector<8x1xf32>, vector<8x8xf32>)  : i32 {
      %98 = arith.index_cast %arg14 : i32 to index
      %c0_62 = arith.constant 0 : index
      %c0_63 = arith.constant 0 : index
      %99 = vector.load %arg12[%98, %c0_62, %c0_63] : memref<1x8x64xbf16, #tpu.memory_space<vmem>>, vector<1x8x8xbf16>
      %100 = vector.shape_cast %99 : vector<1x8x8xbf16> to vector<8x8xbf16>
      %101 = arith.index_cast %arg14 : i32 to index
      %c0_64 = arith.constant 0 : index
      %c32 = arith.constant 32 : index
      %102 = vector.load %arg12[%101, %c0_64, %c32] : memref<1x8x64xbf16, #tpu.memory_space<vmem>>, vector<1x8x8xbf16>
      %103 = vector.shape_cast %102 : vector<1x8x8xbf16> to vector<8x8xbf16>
      "tpu.trace_start"() <{level = 10 : i32, message = "qd,kd->qk"}> : () -> ()
      %cst_65 = arith.constant dense<0.000000e+00> : vector<8x8xf32>
      %104 = tpu.matmul %18, %100, %cst_65 {dimension_numbers = #tpu.dot_dimension_numbers<[1], [1], [0], [0], [0, 0, 1, 0], [], []>} : vector<8x8xbf16>, vector<8x8xbf16>, vector<8x8xf32> -> vector<8x8xf32>
      "tpu.trace_stop"() : () -> ()
      %105 = arith.cmpi slt, %arg14, %arg1 : i32
      %106 = vector.broadcast %105 : i1 to vector<8x8xi1>
      %107 = arith.ori %106, %16 : vector<8x8xi1>
      %108 = vector.broadcast %cst_13 : f32 to vector<8x8xf32>
      %109 = arith.select %107, %104, %108 : vector<8x8xi1>, vector<8x8xf32>
      %cst_66 = arith.constant dense<0xFF800000> : vector<8xf32>
      %110 = vector.multi_reduction <maximumf>, %109, %cst_66 [1] : vector<8x8xf32> to vector<8xf32>
      %111 = vector.shape_cast %110 : vector<8xf32> to vector<8x1xf32>
      %112 = arith.maximumf %arg15, %111 : vector<8x1xf32>
      %113 = arith.subf %arg15, %112 : vector<8x1xf32>
      %114 = math.exp %113 : vector<8x1xf32>
      %115 = vector.broadcast %112 : vector<8x1xf32> to vector<8x8xf32>
      %116 = arith.subf %109, %115 : vector<8x8xf32>
      %117 = math.exp %116 : vector<8x8xf32>
      %118 = arith.mulf %114, %arg16 : vector<8x1xf32>
      %cst_67 = arith.constant dense<0.000000e+00> : vector<8xf32>
      %119 = vector.multi_reduction <add>, %117, %cst_67 [1] : vector<8x8xf32> to vector<8xf32>
      %120 = vector.shape_cast %119 : vector<8xf32> to vector<8x1xf32>
      %121 = arith.addf %118, %120 : vector<8x1xf32>
      %122 = vector.broadcast %114 : vector<8x1xf32> to vector<8x8xf32>
      %123 = arith.mulf %122, %arg17 : vector<8x8xf32>
      %124 = arith.truncf %117 : vector<8x8xf32> to vector<8x8xbf16>
      %cst_68 = arith.constant dense<0.000000e+00> : vector<8x8xf32>
      %125 = tpu.matmul %124, %103, %cst_68 {dimension_numbers = #tpu.dot_dimension_numbers<[1], [0], [0], [1], [0, 0, 1, 1], [], []>} : vector<8x8xbf16>, vector<8x8xbf16>, vector<8x8xf32> -> vector<8x8xf32>
      %126 = arith.addf %123, %125 : vector<8x8xf32>
      scf.yield %112, %121, %126 : vector<8x1xf32>, vector<8x1xf32>, vector<8x8xf32>
    }
    %26 = tpu.reciprocal %25#1 {approx = true} : vector<8x1xf32> -> vector<8x1xf32>
    %27 = vector.broadcast %26 : vector<8x1xf32> to vector<8x8xf32>
    %28 = arith.mulf %25#2, %27 : vector<8x8xf32>
    %29 = arith.truncf %28 : vector<8x8xf32> to vector<8x8xbf16>
    %c0_15 = arith.constant 0 : index
    %c0_16 = arith.constant 0 : index
    %30 = vector.load %arg13[%c0_15, %c0_16] : memref<8x32xbf16, #tpu.memory_space<vmem>>, vector<8x8xbf16>
    tpu.vector_store %arg13[%c0_15, %c0_16], %29 {strides = array<i32>} : memref<8x32xbf16, #tpu.memory_space<vmem>>, vector<8x8xbf16>,
    %31 = vector.extract_strided_slice %6 {offsets = [0, 8], sizes = [8, 8], strides = [1, 1]} : vector<8x32xf32> to vector<8x8xf32>
    %32 = arith.truncf %31 : vector<8x8xf32> to vector<8x8xbf16>
    %cst_17 = arith.constant 0xFF800000 : f32
    %33 = vector.broadcast %cst_17 : f32 to vector<8x1xf32>
    %cst_18 = arith.constant 0.000000e+00 : f32
    %34 = vector.broadcast %cst_18 : f32 to vector<8x1xf32>
    %cst_19 = arith.constant 0.000000e+00 : f32
    %35 = vector.broadcast %cst_19 : f32 to vector<8x8xf32>
    %c1_i32_20 = arith.constant 1 : i32
    %36 = arith.addi %arg1, %c1_i32_20 : i32
    %cst_21 = arith.constant -1.000000e+30 : f32
    %c0_i32_22 = arith.constant 0 : i32
    %37 = arith.subi %36, %c0_i32_22 : i32
    %38 = arith.addi %c0_i32_22, %37 : i32
    %c1_i32_23 = arith.constant 1 : i32
    %39:3 = scf.for %arg14 = %c0_i32_22 to %38 step %c1_i32_23 iter_args(%arg15 = %33, %arg16 = %34, %arg17 = %35) -> (vector<8x1xf32>, vector<8x1xf32>, vector<8x8xf32>)  : i32 {
      %98 = arith.index_cast %arg14 : i32 to index
      %c0_62 = arith.constant 0 : index
      %c8_63 = arith.constant 8 : index
      %99 = vector.load %arg12[%98, %c0_62, %c8_63] : memref<1x8x64xbf16, #tpu.memory_space<vmem>>, vector<1x8x8xbf16>
      %100 = vector.shape_cast %99 : vector<1x8x8xbf16> to vector<8x8xbf16>
      %101 = arith.index_cast %arg14 : i32 to index
      %c0_64 = arith.constant 0 : index
      %c40 = arith.constant 40 : index
      %102 = vector.load %arg12[%101, %c0_64, %c40] : memref<1x8x64xbf16, #tpu.memory_space<vmem>>, vector<1x8x8xbf16>
      %103 = vector.shape_cast %102 : vector<1x8x8xbf16> to vector<8x8xbf16>
      "tpu.trace_start"() <{level = 10 : i32, message = "qd,kd->qk"}> : () -> ()
      %cst_65 = arith.constant dense<0.000000e+00> : vector<8x8xf32>
      %104 = tpu.matmul %32, %100, %cst_65 {dimension_numbers = #tpu.dot_dimension_numbers<[1], [1], [0], [0], [0, 0, 1, 0], [], []>} : vector<8x8xbf16>, vector<8x8xbf16>, vector<8x8xf32> -> vector<8x8xf32>
      "tpu.trace_stop"() : () -> ()
      %105 = arith.cmpi slt, %arg14, %arg1 : i32
      %106 = vector.broadcast %105 : i1 to vector<8x8xi1>
      %107 = arith.ori %106, %16 : vector<8x8xi1>
      %108 = vector.broadcast %cst_21 : f32 to vector<8x8xf32>
      %109 = arith.select %107, %104, %108 : vector<8x8xi1>, vector<8x8xf32>
      %cst_66 = arith.constant dense<0xFF800000> : vector<8xf32>
      %110 = vector.multi_reduction <maximumf>, %109, %cst_66 [1] : vector<8x8xf32> to vector<8xf32>
      %111 = vector.shape_cast %110 : vector<8xf32> to vector<8x1xf32>
      %112 = arith.maximumf %arg15, %111 : vector<8x1xf32>
      %113 = arith.subf %arg15, %112 : vector<8x1xf32>
      %114 = math.exp %113 : vector<8x1xf32>
      %115 = vector.broadcast %112 : vector<8x1xf32> to vector<8x8xf32>
      %116 = arith.subf %109, %115 : vector<8x8xf32>
      %117 = math.exp %116 : vector<8x8xf32>
      %118 = arith.mulf %114, %arg16 : vector<8x1xf32>
      %cst_67 = arith.constant dense<0.000000e+00> : vector<8xf32>
      %119 = vector.multi_reduction <add>, %117, %cst_67 [1] : vector<8x8xf32> to vector<8xf32>
      %120 = vector.shape_cast %119 : vector<8xf32> to vector<8x1xf32>
      %121 = arith.addf %118, %120 : vector<8x1xf32>
      %122 = vector.broadcast %114 : vector<8x1xf32> to vector<8x8xf32>
      %123 = arith.mulf %122, %arg17 : vector<8x8xf32>
      %124 = arith.truncf %117 : vector<8x8xf32> to vector<8x8xbf16>
      %cst_68 = arith.constant dense<0.000000e+00> : vector<8x8xf32>
      %125 = tpu.matmul %124, %103, %cst_68 {dimension_numbers = #tpu.dot_dimension_numbers<[1], [0], [0], [1], [0, 0, 1, 1], [], []>} : vector<8x8xbf16>, vector<8x8xbf16>, vector<8x8xf32> -> vector<8x8xf32>
      %126 = arith.addf %123, %125 : vector<8x8xf32>
      scf.yield %112, %121, %126 : vector<8x1xf32>, vector<8x1xf32>, vector<8x8xf32>
    }
    %40 = tpu.reciprocal %39#1 {approx = true} : vector<8x1xf32> -> vector<8x1xf32>
    %41 = vector.broadcast %40 : vector<8x1xf32> to vector<8x8xf32>
    %42 = arith.mulf %39#2, %41 : vector<8x8xf32>
    %43 = arith.truncf %42 : vector<8x8xf32> to vector<8x8xbf16>
    %c0_24 = arith.constant 0 : index
    %c8 = arith.constant 8 : index
    %44 = vector.load %arg13[%c0_24, %c8] : memref<8x32xbf16, #tpu.memory_space<vmem>>, vector<8x8xbf16>
    tpu.vector_store %arg13[%c0_24, %c8], %43 {strides = array<i32>} : memref<8x32xbf16, #tpu.memory_space<vmem>>, vector<8x8xbf16>,
    %45 = vector.extract_strided_slice %6 {offsets = [0, 16], sizes = [8, 8], strides = [1, 1]} : vector<8x32xf32> to vector<8x8xf32>
    %46 = arith.truncf %45 : vector<8x8xf32> to vector<8x8xbf16>
    %cst_25 = arith.constant 0xFF800000 : f32
    %47 = vector.broadcast %cst_25 : f32 to vector<8x1xf32>
    %cst_26 = arith.constant 0.000000e+00 : f32
    %48 = vector.broadcast %cst_26 : f32 to vector<8x1xf32>
    %cst_27 = arith.constant 0.000000e+00 : f32
    %49 = vector.broadcast %cst_27 : f32 to vector<8x8xf32>
    %c1_i32_28 = arith.constant 1 : i32
    %50 = arith.addi %arg1, %c1_i32_28 : i32
    %cst_29 = arith.constant -1.000000e+30 : f32
    %c0_i32_30 = arith.constant 0 : i32
    %51 = arith.subi %50, %c0_i32_30 : i32
    %52 = arith.addi %c0_i32_30, %51 : i32
    %c1_i32_31 = arith.constant 1 : i32
    %53:3 = scf.for %arg14 = %c0_i32_30 to %52 step %c1_i32_31 iter_args(%arg15 = %47, %arg16 = %48, %arg17 = %49) -> (vector<8x1xf32>, vector<8x1xf32>, vector<8x8xf32>)  : i32 {
      %98 = arith.index_cast %arg14 : i32 to index
      %c0_62 = arith.constant 0 : index
      %c16_63 = arith.constant 16 : index
      %99 = vector.load %arg12[%98, %c0_62, %c16_63] : memref<1x8x64xbf16, #tpu.memory_space<vmem>>, vector<1x8x8xbf16>
      %100 = vector.shape_cast %99 : vector<1x8x8xbf16> to vector<8x8xbf16>
      %101 = arith.index_cast %arg14 : i32 to index
      %c0_64 = arith.constant 0 : index
      %c48 = arith.constant 48 : index
      %102 = vector.load %arg12[%101, %c0_64, %c48] : memref<1x8x64xbf16, #tpu.memory_space<vmem>>, vector<1x8x8xbf16>
      %103 = vector.shape_cast %102 : vector<1x8x8xbf16> to vector<8x8xbf16>
      "tpu.trace_start"() <{level = 10 : i32, message = "qd,kd->qk"}> : () -> ()
      %cst_65 = arith.constant dense<0.000000e+00> : vector<8x8xf32>
      %104 = tpu.matmul %46, %100, %cst_65 {dimension_numbers = #tpu.dot_dimension_numbers<[1], [1], [0], [0], [0, 0, 1, 0], [], []>} : vector<8x8xbf16>, vector<8x8xbf16>, vector<8x8xf32> -> vector<8x8xf32>
      "tpu.trace_stop"() : () -> ()
      %105 = arith.cmpi slt, %arg14, %arg1 : i32
      %106 = vector.broadcast %105 : i1 to vector<8x8xi1>
      %107 = arith.ori %106, %16 : vector<8x8xi1>
      %108 = vector.broadcast %cst_29 : f32 to vector<8x8xf32>
      %109 = arith.select %107, %104, %108 : vector<8x8xi1>, vector<8x8xf32>
      %cst_66 = arith.constant dense<0xFF800000> : vector<8xf32>
      %110 = vector.multi_reduction <maximumf>, %109, %cst_66 [1] : vector<8x8xf32> to vector<8xf32>
      %111 = vector.shape_cast %110 : vector<8xf32> to vector<8x1xf32>
      %112 = arith.maximumf %arg15, %111 : vector<8x1xf32>
      %113 = arith.subf %arg15, %112 : vector<8x1xf32>
      %114 = math.exp %113 : vector<8x1xf32>
      %115 = vector.broadcast %112 : vector<8x1xf32> to vector<8x8xf32>
      %116 = arith.subf %109, %115 : vector<8x8xf32>
      %117 = math.exp %116 : vector<8x8xf32>
      %118 = arith.mulf %114, %arg16 : vector<8x1xf32>
      %cst_67 = arith.constant dense<0.000000e+00> : vector<8xf32>
      %119 = vector.multi_reduction <add>, %117, %cst_67 [1] : vector<8x8xf32> to vector<8xf32>
      %120 = vector.shape_cast %119 : vector<8xf32> to vector<8x1xf32>
      %121 = arith.addf %118, %120 : vector<8x1xf32>
      %122 = vector.broadcast %114 : vector<8x1xf32> to vector<8x8xf32>
      %123 = arith.mulf %122, %arg17 : vector<8x8xf32>
      %124 = arith.truncf %117 : vector<8x8xf32> to vector<8x8xbf16>
      %cst_68 = arith.constant dense<0.000000e+00> : vector<8x8xf32>
      %125 = tpu.matmul %124, %103, %cst_68 {dimension_numbers = #tpu.dot_dimension_numbers<[1], [0], [0], [1], [0, 0, 1, 1], [], []>} : vector<8x8xbf16>, vector<8x8xbf16>, vector<8x8xf32> -> vector<8x8xf32>
      %126 = arith.addf %123, %125 : vector<8x8xf32>
      scf.yield %112, %121, %126 : vector<8x1xf32>, vector<8x1xf32>, vector<8x8xf32>
    }
    %54 = tpu.reciprocal %53#1 {approx = true} : vector<8x1xf32> -> vector<8x1xf32>
    %55 = vector.broadcast %54 : vector<8x1xf32> to vector<8x8xf32>
    %56 = arith.mulf %53#2, %55 : vector<8x8xf32>
    %57 = arith.truncf %56 : vector<8x8xf32> to vector<8x8xbf16>
    %c0_32 = arith.constant 0 : index
    %c16 = arith.constant 16 : index
    %58 = vector.load %arg13[%c0_32, %c16] : memref<8x32xbf16, #tpu.memory_space<vmem>>, vector<8x8xbf16>
    tpu.vector_store %arg13[%c0_32, %c16], %57 {strides = array<i32>} : memref<8x32xbf16, #tpu.memory_space<vmem>>, vector<8x8xbf16>,
    %59 = vector.extract_strided_slice %6 {offsets = [0, 24], sizes = [8, 8], strides = [1, 1]} : vector<8x32xf32> to vector<8x8xf32>
    %60 = arith.truncf %59 : vector<8x8xf32> to vector<8x8xbf16>
    %cst_33 = arith.constant 0xFF800000 : f32
    %61 = vector.broadcast %cst_33 : f32 to vector<8x1xf32>
    %cst_34 = arith.constant 0.000000e+00 : f32
    %62 = vector.broadcast %cst_34 : f32 to vector<8x1xf32>
    %cst_35 = arith.constant 0.000000e+00 : f32
    %63 = vector.broadcast %cst_35 : f32 to vector<8x8xf32>
    %c1_i32_36 = arith.constant 1 : i32
    %64 = arith.addi %arg1, %c1_i32_36 : i32
    %cst_37 = arith.constant -1.000000e+30 : f32
    %c0_i32_38 = arith.constant 0 : i32
    %65 = arith.subi %64, %c0_i32_38 : i32
    %66 = arith.addi %c0_i32_38, %65 : i32
    %c1_i32_39 = arith.constant 1 : i32
    %67:3 = scf.for %arg14 = %c0_i32_38 to %66 step %c1_i32_39 iter_args(%arg15 = %61, %arg16 = %62, %arg17 = %63) -> (vector<8x1xf32>, vector<8x1xf32>, vector<8x8xf32>)  : i32 {
      %98 = arith.index_cast %arg14 : i32 to index
      %c0_62 = arith.constant 0 : index
      %c24_63 = arith.constant 24 : index
      %99 = vector.load %arg12[%98, %c0_62, %c24_63] : memref<1x8x64xbf16, #tpu.memory_space<vmem>>, vector<1x8x8xbf16>
      %100 = vector.shape_cast %99 : vector<1x8x8xbf16> to vector<8x8xbf16>
      %101 = arith.index_cast %arg14 : i32 to index
      %c0_64 = arith.constant 0 : index
      %c56 = arith.constant 56 : index
      %102 = vector.load %arg12[%101, %c0_64, %c56] : memref<1x8x64xbf16, #tpu.memory_space<vmem>>, vector<1x8x8xbf16>
      %103 = vector.shape_cast %102 : vector<1x8x8xbf16> to vector<8x8xbf16>
      "tpu.trace_start"() <{level = 10 : i32, message = "qd,kd->qk"}> : () -> ()
      %cst_65 = arith.constant dense<0.000000e+00> : vector<8x8xf32>
      %104 = tpu.matmul %60, %100, %cst_65 {dimension_numbers = #tpu.dot_dimension_numbers<[1], [1], [0], [0], [0, 0, 1, 0], [], []>} : vector<8x8xbf16>, vector<8x8xbf16>, vector<8x8xf32> -> vector<8x8xf32>
      "tpu.trace_stop"() : () -> ()
      %105 = arith.cmpi slt, %arg14, %arg1 : i32
      %106 = vector.broadcast %105 : i1 to vector<8x8xi1>
      %107 = arith.ori %106, %16 : vector<8x8xi1>
      %108 = vector.broadcast %cst_37 : f32 to vector<8x8xf32>
      %109 = arith.select %107, %104, %108 : vector<8x8xi1>, vector<8x8xf32>
      %cst_66 = arith.constant dense<0xFF800000> : vector<8xf32>
      %110 = vector.multi_reduction <maximumf>, %109, %cst_66 [1] : vector<8x8xf32> to vector<8xf32>
      %111 = vector.shape_cast %110 : vector<8xf32> to vector<8x1xf32>
      %112 = arith.maximumf %arg15, %111 : vector<8x1xf32>
      %113 = arith.subf %arg15, %112 : vector<8x1xf32>
      %114 = math.exp %113 : vector<8x1xf32>
      %115 = vector.broadcast %112 : vector<8x1xf32> to vector<8x8xf32>
      %116 = arith.subf %109, %115 : vector<8x8xf32>
      %117 = math.exp %116 : vector<8x8xf32>
      %118 = arith.mulf %114, %arg16 : vector<8x1xf32>
      %cst_67 = arith.constant dense<0.000000e+00> : vector<8xf32>
      %119 = vector.multi_reduction <add>, %117, %cst_67 [1] : vector<8x8xf32> to vector<8xf32>
      %120 = vector.shape_cast %119 : vector<8xf32> to vector<8x1xf32>
      %121 = arith.addf %118, %120 : vector<8x1xf32>
      %122 = vector.broadcast %114 : vector<8x1xf32> to vector<8x8xf32>
      %123 = arith.mulf %122, %arg17 : vector<8x8xf32>
      %124 = arith.truncf %117 : vector<8x8xf32> to vector<8x8xbf16>
      %cst_68 = arith.constant dense<0.000000e+00> : vector<8x8xf32>
      %125 = tpu.matmul %124, %103, %cst_68 {dimension_numbers = #tpu.dot_dimension_numbers<[1], [0], [0], [1], [0, 0, 1, 1], [], []>} : vector<8x8xbf16>, vector<8x8xbf16>, vector<8x8xf32> -> vector<8x8xf32>
      %126 = arith.addf %123, %125 : vector<8x8xf32>
      scf.yield %112, %121, %126 : vector<8x1xf32>, vector<8x1xf32>, vector<8x8xf32>
    }
    %68 = tpu.reciprocal %67#1 {approx = true} : vector<8x1xf32> -> vector<8x1xf32>
    %69 = vector.broadcast %68 : vector<8x1xf32> to vector<8x8xf32>
    %70 = arith.mulf %67#2, %69 : vector<8x8xf32>
    %71 = arith.truncf %70 : vector<8x8xf32> to vector<8x8xbf16>
    %c0_40 = arith.constant 0 : index
    %c24 = arith.constant 24 : index
    %72 = vector.load %arg13[%c0_40, %c24] : memref<8x32xbf16, #tpu.memory_space<vmem>>, vector<8x8xbf16>
    tpu.vector_store %arg13[%c0_40, %c24], %71 {strides = array<i32>} : memref<8x32xbf16, #tpu.memory_space<vmem>>, vector<8x8xbf16>,
    %c0_41 = arith.constant 0 : index
    %c0_42 = arith.constant 0 : index
    %73 = vector.load %arg13[%c0_41, %c0_42] : memref<8x32xbf16, #tpu.memory_space<vmem>>, vector<8x32xbf16>
    %c0_43 = arith.constant 0 : index
    %c0_44 = arith.constant 0 : index
    %74 = vector.load %arg5[%c0_43, %c0_44] : memref<32x32xbf16, #tpu.memory_space<vmem>>, vector<32x32xbf16>
    %cst_45 = arith.constant dense<0.000000e+00> : vector<8x32xf32>
    %75 = tpu.matmul %73, %74, %cst_45 {dimension_numbers = #tpu.dot_dimension_numbers<[1], [0], [0], [1], [0, 0, 1, 1], [], []>} : vector<8x32xbf16>, vector<32x32xbf16>, vector<8x32xf32> -> vector<8x32xf32>
    %c0_46 = arith.constant 0 : index
    %c0_47 = arith.constant 0 : index
    %76 = vector.load %arg6[%c0_46, %c0_47] : memref<1x32xf32, #tpu.memory_space<vmem>>, vector<1x32xf32>
    %77 = vector.broadcast %76 : vector<1x32xf32> to vector<8x32xf32>
    %78 = arith.addf %75, %77 : vector<8x32xf32>
    %79 = arith.addf %1, %78 : vector<8x32xf32>
    %80 = arith.truncf %79 : vector<8x32xf32> to vector<8x32xbf16>
    %c0_48 = arith.constant 0 : index
    %c0_49 = arith.constant 0 : index
    %81 = vector.load %arg7[%c0_48, %c0_49] : memref<32x128xbf16, #tpu.memory_space<vmem>>, vector<32x128xbf16>
    %cst_50 = arith.constant dense<0.000000e+00> : vector<8x128xf32>
    %82 = tpu.matmul %80, %81, %cst_50 {dimension_numbers = #tpu.dot_dimension_numbers<[1], [0], [0], [1], [0, 0, 1, 1], [], []>} : vector<8x32xbf16>, vector<32x128xbf16>, vector<8x128xf32> -> vector<8x128xf32>
    %c0_51 = arith.constant 0 : index
    %c0_52 = arith.constant 0 : index
    %83 = vector.load %arg8[%c0_51, %c0_52] : memref<1x128xf32, #tpu.memory_space<vmem>>, vector<1x128xf32>
    %84 = vector.broadcast %83 : vector<1x128xf32> to vector<8x128xf32>
    %85 = arith.addf %82, %84 : vector<8x128xf32>
    %cst_53 = arith.constant 0.000000e+00 : f32
    %86 = vector.broadcast %cst_53 : f32 to vector<8x128xf32>
    %87 = arith.maximumf %85, %86 : vector<8x128xf32>
    %88 = arith.truncf %87 : vector<8x128xf32> to vector<8x128xbf16>
    %c0_54 = arith.constant 0 : index
    %c0_55 = arith.constant 0 : index
    %89 = vector.load %arg9[%c0_54, %c0_55] : memref<128x32xbf16, #tpu.memory_space<vmem>>, vector<128x32xbf16>
    %cst_56 = arith.constant dense<0.000000e+00> : vector<8x32xf32>
    %90 = tpu.matmul %88, %89, %cst_56 {dimension_numbers = #tpu.dot_dimension_numbers<[1], [0], [0], [1], [0, 0, 1, 1], [], []>} : vector<8x128xbf16>, vector<128x32xbf16>, vector<8x32xf32> -> vector<8x32xf32>
    %c0_57 = arith.constant 0 : index
    %c0_58 = arith.constant 0 : index
    %91 = vector.load %arg10[%c0_57, %c0_58] : memref<1x32xf32, #tpu.memory_space<vmem>>, vector<1x32xf32>
    %92 = vector.broadcast %91 : vector<1x32xf32> to vector<8x32xf32>
    %93 = arith.addf %90, %92 : vector<8x32xf32>
    %94 = arith.addf %79, %93 : vector<8x32xf32>
    %c0_59 = arith.constant 0 : index
    %c0_60 = arith.constant 0 : index
    %c0_61 = arith.constant 0 : index
    %95 = vector.load %arg11[%c0_59, %c0_60, %c0_61] : memref<1x8x32xf32, #tpu.memory_space<vmem>>, vector<1x8x32xf32>
    %96 = vector.shape_cast %95 : vector<1x8x32xf32> to vector<8x32xf32>
    %97 = vector.shape_cast %94 : vector<8x32xf32> to vector<1x8x32xf32>
    tpu.vector_store %arg11[%c0_59, %c0_60, %c0_61], %97 {strides = array<i32>} : memref<1x8x32xf32, #tpu.memory_space<vmem>>, vector<1x8x32xf32>,
    return
  }
  func.func @transform_0(%arg0: i32, %arg1: i32) -> (i32, i32, i32) {
    %c0_i32 = arith.constant 0 : i32
    %c0_i32_0 = arith.constant 0 : i32
    return %arg0, %arg1, %c0_i32 : i32, i32, i32
  }
  func.func @transform_1(%arg0: i32, %arg1: i32) -> (i32, i32) {
    %c0_i32 = arith.constant 0 : i32
    %c0_i32_0 = arith.constant 0 : i32
    %c0_i32_1 = arith.constant 0 : i32
    return %c0_i32, %c0_i32_0 : i32, i32
  }
  func.func @transform_2(%arg0: i32, %arg1: i32) -> (i32, i32) {
    %c0_i32 = arith.constant 0 : i32
    %c0_i32_0 = arith.constant 0 : i32
    %c0_i32_1 = arith.constant 0 : i32
    return %c0_i32, %c0_i32_0 : i32, i32
  }
  func.func @transform_3(%arg0: i32, %arg1: i32) -> (i32, i32) {
    %c0_i32 = arith.constant 0 : i32
    %c0_i32_0 = arith.constant 0 : i32
    %c0_i32_1 = arith.constant 0 : i32
    return %c0_i32, %c0_i32_0 : i32, i32
  }
  func.func @transform_4(%arg0: i32, %arg1: i32) -> (i32, i32) {
    %c0_i32 = arith.constant 0 : i32
    %c0_i32_0 = arith.constant 0 : i32
    %c0_i32_1 = arith.constant 0 : i32
    return %c0_i32, %c0_i32_0 : i32, i32
  }
  func.func @transform_5(%arg0: i32, %arg1: i32) -> (i32, i32) {
    %c0_i32 = arith.constant 0 : i32
    %c0_i32_0 = arith.constant 0 : i32
    %c0_i32_1 = arith.constant 0 : i32
    return %c0_i32, %c0_i32_0 : i32, i32
  }
  func.func @transform_6(%arg0: i32, %arg1: i32) -> (i32, i32) {
    %c0_i32 = arith.constant 0 : i32
    %c0_i32_0 = arith.constant 0 : i32
    %c0_i32_1 = arith.constant 0 : i32
    return %c0_i32, %c0_i32_0 : i32, i32
  }
  func.func @transform_7(%arg0: i32, %arg1: i32) -> (i32, i32) {
    %c0_i32 = arith.constant 0 : i32
    %c0_i32_0 = arith.constant 0 : i32
    %c0_i32_1 = arith.constant 0 : i32
    return %c0_i32, %c0_i32_0 : i32, i32
  }
  func.func @transform_8(%arg0: i32, %arg1: i32) -> (i32, i32) {
    %c0_i32 = arith.constant 0 : i32
    %c0_i32_0 = arith.constant 0 : i32
    %c0_i32_1 = arith.constant 0 : i32
    return %c0_i32, %c0_i32_0 : i32, i32
  }
  func.func @transform_9(%arg0: i32, %arg1: i32) -> (i32, i32, i32) {
    %c0_i32 = arith.constant 0 : i32
    %c0_i32_0 = arith.constant 0 : i32
    return %arg0, %arg1, %c0_i32 : i32, i32, i32
  }
}

</mosaic_0001>

<llo_original>
// kernel: tpu_custom_call.1
$region0: #{tpu_custom_call.1}
  #allocation0 [shape = 'u32[]', space=smem, size = 0x4, offset = 0x4, fixed_abs, tag = 'smem constant byte address 0x4 - core index']
  #allocation1 [shape = 'u32[72,128]{1,0:T(1,128)}', space=vmem, size = 0x9000, scoped, tag = 'internal scratch']
  #allocation2 [shape = 'bf16[1,8,64]{2,1,0:T(8,128)(2,1)}', space=vmem, size = 0x800, scoped, tag = 'scratch operand']
  #allocation3 [shape = 'bf16[8,32]{1,0:T(8,128)(2,1)}', space=vmem, size = 0x800, scoped, tag = 'scratch operand']
  %s0 = inlined_call_operand.vmem [shape: f32[2,8,32], index: 0, kind: input, shape index: {}]
  %s1 = inlined_call_operand.vmem [shape: bf16[32,32], index: 1, kind: input, shape index: {}]
  %s2 = inlined_call_operand.vmem [shape: bf16[32,64], index: 2, kind: input, shape index: {}]
  %s3 = inlined_call_operand.vmem [shape: bf16[32,32], index: 3, kind: input, shape index: {}]
  %s4 = inlined_call_operand.vmem [shape: f32[1,32], index: 4, kind: input, shape index: {}]
  %s5 = inlined_call_operand.vmem [shape: bf16[32,128], index: 5, kind: input, shape index: {}]
  %s6 = inlined_call_operand.vmem [shape: f32[1,128], index: 6, kind: input, shape index: {}]
  %s7 = inlined_call_operand.vmem [shape: bf16[128,32], index: 7, kind: input, shape index: {}]
  %s8 = inlined_call_operand.vmem [shape: f32[1,32], index: 8, kind: input, shape index: {}]
  %s9 = inlined_call_operand.hbm [shape: f32[2,8,32], index: 9, kind: output, shape index: {}]
  %s10 = sld [smem:[#allocation0]]
  $region97: #{tpu_custom_call.1} parent=0
    _
  %s12 = ssub.s32 1, %s10
  %s13 = scalar_select 0, %s12, %s10
  $region1: #{tpu_custom_call.1} parent=0
    #allocation4 [shape = 'u8[8192]{0}', space=vmem, size = 0x2000, scoped, tag = 'output window, operand 0']
    #allocation5 [shape = 's32[2]{0}', space=sflag, size = 0x8, scoped, tag = 'scoped memory for tpu_custom_call.1']
    %14 = vsyncpa [#allocation5], 0
    %s15 = scalar_lea.sflag [#allocation5], 1
    %16 = vsyncpa %s15, 0
    loop: start=0, step=1, limit=4
    $region2: #{tpu_custom_call.1} parent=1 // loop_pre_header
      _
    $region3: #{tpu_custom_call.1} parent=1 // loop_header
      %s18 = sphi 0, %s22
      %p19 = scmp.ge.s32.totalorder %s18, 4
      %s25 = sphi 0, %s37
      %s26 = sphi 0, %s33
      %s27 = sphi 0, %s25
      %s28 = sphi 0, %s26
      %s29 = sphi 0, %s27
      %s30 = sphi 0, %s28
      %s42 = sphi 0, %s44
      %s45 = sphi 0, %s42
      %s46 = sphi 0, %s45
      %s62 = sphi 0, %s46
      %s66 = sphi 0, %s66
      %s68 = sphi 0, %s66
      %s69 = sphi 0, %s68
      %s83 = sphi 0, %s69
      %s87 = sphi 0, %s87
      %s89 = sphi 0, %s87
      %s90 = sphi 0, %s89
      %s104 = sphi 0, %s90
      %s108 = sphi 0, %s108
      %s110 = sphi 0, %s108
      %s111 = sphi 0, %s110
      %s125 = sphi 0, %s111
      %s129 = sphi 0, %s129
      %s131 = sphi 0, %s129
      %s132 = sphi 0, %s131
      %s146 = sphi 0, %s132
      %s150 = sphi 0, %s150
      %s152 = sphi 0, %s150
      %s153 = sphi 0, %s152
      %s167 = sphi 0, %s153
      %s171 = sphi 0, %s171
      %s173 = sphi 0, %s171
      %s174 = sphi 0, %s173
      %s188 = sphi 0, %s174
      %s192 = sphi 0, %s192
      %s194 = sphi 0, %s192
      %s195 = sphi 0, %s194
      %s209 = sphi 0, %s195
      %s213 = sphi 0, %s213
      %s215 = sphi 0, %s213
      %s216 = sphi 0, %s215
      %s230 = sphi 0, %s216
      %s238 = sphi 0, %s240
      %s241 = sphi 0, %s238
      %s242 = sphi 0, %s241
      %s258 = sphi 0, %s242
    $region4: #{tpu_custom_call.1} parent=1 // loop_header_branch
      %21 = sbr.rel (%p19) target = $region8
    $region5: #{tpu_custom_call.1} parent=1 // loop_body
      %s23 = ssub.s32 %s18, 1
      %s24 = ssub.s32 %s18, 2
      %s31 = sadd.s32 1, %s26
      %p32 = scmp.ge.s32.totalorder %s31, 1
      %s33 = scalar_select %p32, 0, %s31
      %s34 = sadd.s32 1, %s25
      %s35 = scalar_select %p32, %s34, %s25
      %p36 = scmp.ge.s32.totalorder %s35, 2
      %s37 = scalar_select %p36, 0, %s35
      %s38 = ssub.s32 %s25, %s37
      %s39 = ssub.s32 %s26, %s33
      %s40 = sor.u32 %s38, %s39
      %p41 = scmp.eq.s32.totalorder %s40, 0
      %s43 = sadd.s32 %s42, 1
      %s44 = scalar_select %p41, %s42, %s43
      %p47 = pneg %p41
      %p48 = scmp.eq.s32.totalorder %s18, 1
      %p49 = por %p47, %p48
      %p50 = scmp.ne.s32.totalorder %s42, %s45
      %p51 = scmp.eq.s32.totalorder %s18, 0
      %p52 = por %p50, %p51
      %p53 = scmp.ne.s32.totalorder %s42, %s45
      %p54 = scmp.eq.s32.totalorder %s23, 1
      %p55 = por %p53, %p54
      %p56 = scmp.ne.s32.totalorder %s45, %s46
      %p57 = scmp.eq.s32.totalorder %s23, 0
      %p58 = por %p56, %p57
      %p59 = scmp.ne.s32.totalorder %s45, %s46
      %p60 = scmp.eq.s32.totalorder %s24, 1
      %p61 = por %p59, %p60
      %p63 = scmp.ne.s32.totalorder %s46, %s62
      %p64 = scmp.eq.s32.totalorder %s24, 0
      %p65 = por %p63, %p64
      %s67 = sadd.s32 %s66, 1
      %p70 = scmp.eq.s32.totalorder %s18, 1
      %p71 = scmp.ne.s32.totalorder %s66, %s68
      %p72 = scmp.eq.s32.totalorder %s18, 0
      %p73 = por %p71, %p72
      %p74 = scmp.ne.s32.totalorder %s66, %s68
      %p75 = scmp.eq.s32.totalorder %s23, 1
      %p76 = por %p74, %p75
      %p77 = scmp.ne.s32.totalorder %s68, %s69
      %p78 = scmp.eq.s32.totalorder %s23, 0
      %p79 = por %p77, %p78
      %p80 = scmp.ne.s32.totalorder %s68, %s69
      %p81 = scmp.eq.s32.totalorder %s24, 1
      %p82 = por %p80, %p81
      %p84 = scmp.ne.s32.totalorder %s69, %s83
      %p85 = scmp.eq.s32.totalorder %s24, 0
      %p86 = por %p84, %p85
      %s88 = sadd.s32 %s87, 1
      %p91 = scmp.eq.s32.totalorder %s18, 1
      %p92 = scmp.ne.s32.totalorder %s87, %s89
      %p93 = scmp.eq.s32.totalorder %s18, 0
      %p94 = por %p92, %p93
      %p95 = scmp.ne.s32.totalorder %s87, %s89
      %p96 = scmp.eq.s32.totalorder %s23, 1
      %p97 = por %p95, %p96
      %p98 = scmp.ne.s32.totalorder %s89, %s90
      %p99 = scmp.eq.s32.totalorder %s23, 0
      %p100 = por %p98, %p99
      %p101 = scmp.ne.s32.totalorder %s89, %s90
      %p102 = scmp.eq.s32.totalorder %s24, 1
      %p103 = por %p101, %p102
      %p105 = scmp.ne.s32.totalorder %s90, %s104
      %p106 = scmp.eq.s32.totalorder %s24, 0
      %p107 = por %p105, %p106
      %s109 = sadd.s32 %s108, 1
      %p112 = scmp.eq.s32.totalorder %s18, 1
      %p113 = scmp.ne.s32.totalorder %s108, %s110
      %p114 = scmp.eq.s32.totalorder %s18, 0
      %p115 = por %p113, %p114
      %p116 = scmp.ne.s32.totalorder %s108, %s110
      %p117 = scmp.eq.s32.totalorder %s23, 1
      %p118 = por %p116, %p117
      %p119 = scmp.ne.s32.totalorder %s110, %s111
      %p120 = scmp.eq.s32.totalorder %s23, 0
      %p121 = por %p119, %p120
      %p122 = scmp.ne.s32.totalorder %s110, %s111
      %p123 = scmp.eq.s32.totalorder %s24, 1
      %p124 = por %p122, %p123
      %p126 = scmp.ne.s32.totalorder %s111, %s125
      %p127 = scmp.eq.s32.totalorder %s24, 0
      %p128 = por %p126, %p127
      %s130 = sadd.s32 %s129, 1
      %p133 = scmp.eq.s32.totalorder %s18, 1
      %p134 = scmp.ne.s32.totalorder %s129, %s131
      %p135 = scmp.eq.s32.totalorder %s18, 0
      %p136 = por %p134, %p135
      %p137 = scmp.ne.s32.totalorder %s129, %s131
      %p138 = scmp.eq.s32.totalorder %s23, 1
      %p139 = por %p137, %p138
      %p140 = scmp.ne.s32.totalorder %s131, %s132
      %p141 = scmp.eq.s32.totalorder %s23, 0
      %p142 = por %p140, %p141
      %p143 = scmp.ne.s32.totalorder %s131, %s132
      %p144 = scmp.eq.s32.totalorder %s24, 1
      %p145 = por %p143, %p144
      %p147 = scmp.ne.s32.totalorder %s132, %s146
      %p148 = scmp.eq.s32.totalorder %s24, 0
      %p149 = por %p147, %p148
      %s151 = sadd.s32 %s150, 1
      %p154 = scmp.eq.s32.totalorder %s18, 1
      %p155 = scmp.ne.s32.totalorder %s150, %s152
      %p156 = scmp.eq.s32.totalorder %s18, 0
      %p157 = por %p155, %p156
      %p158 = scmp.ne.s32.totalorder %s150, %s152
      %p159 = scmp.eq.s32.totalorder %s23, 1
      %p160 = por %p158, %p159
      %p161 = scmp.ne.s32.totalorder %s152, %s153
      %p162 = scmp.eq.s32.totalorder %s23, 0
      %p163 = por %p161, %p162
      %p164 = scmp.ne.s32.totalorder %s152, %s153
      %p165 = scmp.eq.s32.totalorder %s24, 1
      %p166 = por %p164, %p165
      %p168 = scmp.ne.s32.totalorder %s153, %s167
      %p169 = scmp.eq.s32.totalorder %s24, 0
      %p170 = por %p168, %p169
      %s172 = sadd.s32 %s171, 1
      %p175 = scmp.eq.s32.totalorder %s18, 1
      %p176 = scmp.ne.s32.totalorder %s171, %s173
      %p177 = scmp.eq.s32.totalorder %s18, 0
      %p178 = por %p176, %p177
      %p179 = scmp.ne.s32.totalorder %s171, %s173
      %p180 = scmp.eq.s32.totalorder %s23, 1
      %p181 = por %p179, %p180
      %p182 = scmp.ne.s32.totalorder %s173, %s174
      %p183 = scmp.eq.s32.totalorder %s23, 0
      %p184 = por %p182, %p183
      %p185 = scmp.ne.s32.totalorder %s173, %s174
      %p186 = scmp.eq.s32.totalorder %s24, 1
      %p187 = por %p185, %p186
      %p189 = scmp.ne.s32.totalorder %s174, %s188
      %p190 = scmp.eq.s32.totalorder %s24, 0
      %p191 = por %p189, %p190
      %s193 = sadd.s32 %s192, 1
      %p196 = scmp.eq.s32.totalorder %s18, 1
      %p197 = scmp.ne.s32.totalorder %s192, %s194
      %p198 = scmp.eq.s32.totalorder %s18, 0
      %p199 = por %p197, %p198
      %p200 = scmp.ne.s32.totalorder %s192, %s194
      %p201 = scmp.eq.s32.totalorder %s23, 1
      %p202 = por %p200, %p201
      %p203 = scmp.ne.s32.totalorder %s194, %s195
      %p204 = scmp.eq.s32.totalorder %s23, 0
      %p205 = por %p203, %p204
      %p206 = scmp.ne.s32.totalorder %s194, %s195
      %p207 = scmp.eq.s32.totalorder %s24, 1
      %p208 = por %p206, %p207
      %p210 = scmp.ne.s32.totalorder %s195, %s209
      %p211 = scmp.eq.s32.totalorder %s24, 0
      %p212 = por %p210, %p211
      %s214 = sadd.s32 %s213, 1
      %p217 = scmp.eq.s32.totalorder %s18, 1
      %p218 = scmp.ne.s32.totalorder %s213, %s215
      %p219 = scmp.eq.s32.totalorder %s18, 0
      %p220 = por %p218, %p219
      %p221 = scmp.ne.s32.totalorder %s213, %s215
      %p222 = scmp.eq.s32.totalorder %s23, 1
      %p223 = por %p221, %p222
      %p224 = scmp.ne.s32.totalorder %s215, %s216
      %p225 = scmp.eq.s32.totalorder %s23, 0
      %p226 = por %p224, %p225
      %p227 = scmp.ne.s32.totalorder %s215, %s216
      %p228 = scmp.eq.s32.totalorder %s24, 1
      %p229 = por %p227, %p228
      %p231 = scmp.ne.s32.totalorder %s216, %s230
      %p232 = scmp.eq.s32.totalorder %s24, 0
      %p233 = por %p231, %p232
      %s234 = ssub.s32 %s25, %s37
      %s235 = ssub.s32 %s26, %s33
      %s236 = sor.u32 %s234, %s235
      %p237 = scmp.eq.s32.totalorder %s236, 0
      %s239 = sadd.s32 %s238, 1
      %s240 = scalar_select %p237, %s238, %s239
      %p243 = pneg %p237
      %p244 = scmp.eq.s32.totalorder %s18, 1
      %p245 = por %p243, %p244
      %p246 = scmp.ne.s32.totalorder %s238, %s241
      %p247 = scmp.eq.s32.totalorder %s18, 0
      %p248 = por %p246, %p247
      %p249 = scmp.ne.s32.totalorder %s238, %s241
      %p250 = scmp.eq.s32.totalorder %s23, 1
      %p251 = por %p249, %p250
      %p252 = scmp.ne.s32.totalorder %s241, %s242
      %p253 = scmp.eq.s32.totalorder %s23, 0
      %p254 = por %p252, %p253
      %p255 = scmp.ne.s32.totalorder %s241, %s242
      %p256 = scmp.eq.s32.totalorder %s24, 1
      %p257 = por %p255, %p256
      %p259 = scmp.ne.s32.totalorder %s242, %s258
      %p260 = scmp.eq.s32.totalorder %s24, 0
      %p261 = por %p259, %p260
      %p262 = scmp.le.s32.totalorder 1, %s18
      %p263 = scmp.lt.s32.totalorder %s18, 3
      %p264 = pnand %p262, %p263
      %p265 = pneg %p264
      // Predicated region
      $region9: #{tpu_custom_call.1} parent=5 // pred_check
        _
      $region10: #{tpu_custom_call.1} parent=5 // pred_check_branch
        %267 = sbr.rel (%p264) target = $region12
      $region11: #{tpu_custom_call.1} parent=5 // pred_region
        %s268 = ssub.s32 %s18, 1
        // Predicated region
        $region13: #{tpu_custom_call.1} parent=11 // pred_check
          %p269 = pneg %p79
        $region14: #{tpu_custom_call.1} parent=11 // pred_check_branch
          %271 = sbr.rel (%p269) target = $region16
        $region15: #{tpu_custom_call.1} parent=11 // pred_region
          _
        $region16: #{tpu_custom_call.1} parent=11 // pred_fallthru
          _
        // Predicated region
        $region17: #{tpu_custom_call.1} parent=11 // pred_check
          %p272 = pneg %p100
        $region18: #{tpu_custom_call.1} parent=11 // pred_check_branch
          %274 = sbr.rel (%p272) target = $region20
        $region19: #{tpu_custom_call.1} parent=11 // pred_region
          _
        $region20: #{tpu_custom_call.1} parent=11 // pred_fallthru
          _
        // Predicated region
        $region21: #{tpu_custom_call.1} parent=11 // pred_check
          %p275 = pneg %p121
        $region22: #{tpu_custom_call.1} parent=11 // pred_check_branch
          %277 = sbr.rel (%p275) target = $region24
        $region23: #{tpu_custom_call.1} parent=11 // pred_region
          _
        $region24: #{tpu_custom_call.1} parent=11 // pred_fallthru
          _
        // Predicated region
        $region25: #{tpu_custom_call.1} parent=11 // pred_check
          %p278 = pneg %p142
        $region26: #{tpu_custom_call.1} parent=11 // pred_check_branch
          %280 = sbr.rel (%p278) target = $region28
        $region27: #{tpu_custom_call.1} parent=11 // pred_region
          _
        $region28: #{tpu_custom_call.1} parent=11 // pred_fallthru
          _
        // Predicated region
        $region29: #{tpu_custom_call.1} parent=11 // pred_check
          %p281 = pneg %p163
        $region30: #{tpu_custom_call.1} parent=11 // pred_check_branch
          %283 = sbr.rel (%p281) target = $region32
        $region31: #{tpu_custom_call.1} parent=11 // pred_region
          _
        $region32: #{tpu_custom_call.1} parent=11 // pred_fallthru
          _
        // Predicated region
        $region33: #{tpu_custom_call.1} parent=11 // pred_check
          %p284 = pneg %p184
        $region34: #{tpu_custom_call.1} parent=11 // pred_check_branch
          %286 = sbr.rel (%p284) target = $region36
        $region35: #{tpu_custom_call.1} parent=11 // pred_region
          _
        $region36: #{tpu_custom_call.1} parent=11 // pred_fallthru
          _
        // Predicated region
        $region37: #{tpu_custom_call.1} parent=11 // pred_check
          %p287 = pneg %p205
        $region38: #{tpu_custom_call.1} parent=11 // pred_check_branch
          %289 = sbr.rel (%p287) target = $region40
        $region39: #{tpu_custom_call.1} parent=11 // pred_region
          _
        $region40: #{tpu_custom_call.1} parent=11 // pred_fallthru
          _
        // Predicated region
        $region41: #{tpu_custom_call.1} parent=11 // pred_check
          %p290 = pneg %p226
        $region42: #{tpu_custom_call.1} parent=11 // pred_check_branch
          %292 = sbr.rel (%p290) target = $region44
        $region43: #{tpu_custom_call.1} parent=11 // pred_region
          _
        $region44: #{tpu_custom_call.1} parent=11 // pred_fallthru
          _
      $region12: #{tpu_custom_call.1} parent=5 // pred_fallthru
        _
      %p293 = scmp.lt.s32.totalorder %s18, 2
      // Predicated region
      $region45: #{tpu_custom_call.1} parent=5 // pred_check
        %p294 = pneg %p293
      $region46: #{tpu_custom_call.1} parent=5 // pred_check_branch
        %296 = sbr.rel (%p294) target = $region48
      $region47: #{tpu_custom_call.1} parent=5 // pred_region
        // Predicated region
        $region49: #{tpu_custom_call.1} parent=47 // pred_check
          %p297 = pneg %p52
        $region50: #{tpu_custom_call.1} parent=47 // pred_check_branch
          %299 = sbr.rel (%p297) target = $region52
        $region51: #{tpu_custom_call.1} parent=47 // pred_region
          %p300 = scmp.lt.s32.totalorder %s25, 1
          %s301 = scalar_select %p300, %s25, 1
          %p302 = scmp.lt.s32.totalorder %s26, 0
          %s303 = scalar_select %p302, %s26, 0
          %s304 = sadd.s32 %s303, %s301
          %s305 = smul.addr %s304, 8
          %s306 = scalar_lea.vmem %s0, %s305
        $region52: #{tpu_custom_call.1} parent=47 // pred_fallthru
          _
      $region48: #{tpu_custom_call.1} parent=5 // pred_fallthru
        _
      %p307 = scmp.le.s32.totalorder 1, %s18
      %p308 = scmp.lt.s32.totalorder %s18, 3
      %p309 = pnand %p307, %p308
      %p310 = pneg %p309
      // Predicated region
      $region53: #{tpu_custom_call.1} parent=5 // pred_check
        _
      $region54: #{tpu_custom_call.1} parent=5 // pred_check_branch
        %312 = sbr.rel (%p309) target = $region56
      $region55: #{tpu_custom_call.1} parent=5 // pred_region
        %s313 = ssub.s32 %s18, 1
        %p314 = scmp.lt.s32.totalorder %s27, 1
        %s315 = scalar_select %p314, %s27, 1
        %p316 = scmp.lt.s32.totalorder %s28, 0
        %s317 = scalar_select %p316, %s28, 0
        %s318 = sadd.s32 %s317, %s315
        %s319 = smul.addr %s318, 8
        %s320 = scalar_lea.vmem %s0, %s319
        %p321 = pneg %p58
        %p322 = pneg %p55
        %p323 = pneg %p79
        %p324 = pneg %p76
        %p325 = pneg %p100
        %p326 = pneg %p97
        %p327 = pneg %p121
        %p328 = pneg %p118
        %p329 = pneg %p142
        %p330 = pneg %p139
        %p331 = pneg %p163
        %p332 = pneg %p160
        %p333 = pneg %p184
        %p334 = pneg %p181
        %p335 = pneg %p205
        %p336 = pneg %p202
        %p337 = pneg %p226
        %p338 = pneg %p223
        %p339 = pneg %p254
        %p340 = pneg %p251
        %s341 = sand.u32 %s241, 1
        %s342 = scalar_lea.sflag [#allocation5], %s341
        %s343 = sand.u32 %s241, 1
        %s344 = smul.addr %s343, 8
        %s345 = scalar_lea.vmem [#allocation4], %s344
        %p346 = scmp.lt.s32.totalorder %s27, 1
        %s347 = scalar_select %p346, %s27, 1
        %p348 = scmp.lt.s32.totalorder %s28, 0
        %s349 = scalar_select %p348, %s28, 0
        %s350 = sadd.s32 %s349, %s347
        %s351 = smul.addr %s350, 8
        %s352 = scalar_lea.vmem %s0, %s351
        %v354 = vld [vmem:[%s352] sm:$0xff]
        %v355 = vpack.c.bf16 %v354, %v354
        %v356 = vld [vmem:[%s1] sm:$0xf]
        %v357 = vld [vmem:[%s1 + $0x4] sm:$0xf]
        %v358 = vld [vmem:[%s1 + $0x8] sm:$0xf]
        %v359 = vld [vmem:[%s1 + $0xc] sm:$0xf]
        %v364 = vunpack.c.l.b16 %v356
        %v365 = vunpack.c.l.b16 %v357
        %v366 = vunpack.c.l.b16 %v358
        %v367 = vunpack.c.l.b16 %v359
        %v368 = vpack.c.b16 %v365, %v364
        %v369 = vpack.c.b16 %v367, %v366
        %vm372 = vcmask 261120
        %v374 = vsel %vm372, %v355, 0
        %376 = vmatpush.bf16.msra.mxu0 0
        %377 = vmatpush.bf16.msra.mxu0 0
        %378 = vmatpush.bf16.msra.mxu0 0
        %379 = vmatpush.bf16.msra.mxu0 0
        %380 = vmatpush.bf16.msra.mxu0 0
        %381 = vmatpush.bf16.msra.mxu0 0
        %382 = vmatpush.bf16.msra.mxu0 %v369
        %383 = vmatpush.bf16.msra.mxu0 %v368
        %384 = vmatmul.bf16.gmra.mxu0 %v374
        %v385 = vpop.f32.mrf.mxu0
        %v386 = vadd.f32 0.0, %v385
        %v387 = vpop.f32.mrf.mxu0
        %388 = vdwg.mxu0
        %v389 = vmul.f32 %v386, 0.35355338
        %v390 = vld [vmem:[%s2] sm:$0xf]
        %v391 = vld [vmem:[%s2 + $0x4] sm:$0xf]
        %v392 = vld [vmem:[%s2 + $0x8] sm:$0xf]
        %v393 = vld [vmem:[%s2 + $0xc] sm:$0xf]
        %v398 = vunpack.c.l.b16 %v390
        %v399 = vunpack.c.l.b16 %v391
        %v400 = vunpack.c.l.b16 %v392
        %v401 = vunpack.c.l.b16 %v393
        %v402 = vpack.c.b16 %v399, %v398
        %v403 = vpack.c.b16 %v401, %v400
        %406 = vmatpush.bf16.msra.mxu0 0
        %407 = vmatpush.bf16.msra.mxu0 0
        %408 = vmatpush.bf16.msra.mxu0 0
        %409 = vmatpush.bf16.msra.mxu0 0
        %410 = vmatpush.bf16.msra.mxu0 0
        %411 = vmatpush.bf16.msra.mxu0 0
        %412 = vmatpush.bf16.msra.mxu0 %v403
        %413 = vmatpush.bf16.msra.mxu0 %v402
        %414 = vmatmul.bf16.gmra.mxu0 %v374
        %v415 = vpop.f32.mrf.mxu0
        %v416 = vadd.f32 0.0, %v415
        %v417 = vpop.f32.mrf.mxu0
        %418 = vdwg.mxu0
        %v419 = vpack.c.bf16 %v416, %v416
        %s420 = smul.addr %s28, 4
        %s421 = scalar_lea.vmem [#allocation2], %s420
        %vm422 = vcmask 519168
        %423 = vst.msk [vmem:[%s421] sm:$0xf] %vm422, %v419
        %v424 = vlaneseq
        %v425 = vshrl.u32 %v424, 7
        %v426 = vlaneseq
        %v427 = vand.u32 %v426, 127
        %vm428 = vcmp.le.s32.totalorder %v427, %v425
        %v429 = vpack.c.bf16 %v389, %v389
        %s430 = sadd.s32 %s28, 1
        // While loop
        $region57: #{tpu_custom_call.1} parent=55 // loop_pre_header
          _
        $region58: #{tpu_custom_call.1} parent=55 // loop_header
          %s432 = sphi 0, %s434
          %p433 = scmp.ge.s32.totalorder %s432, %s430
          %v437 = vphi -inf, %v472
          %v438 = vphi 0.0, %v483
          %v439 = vphi 0.0, %v511
        $region59: #{tpu_custom_call.1} parent=55 // loop_header_branch
          %436 = sbr.rel (%p433) target = $region63
        $region60: #{tpu_custom_call.1} parent=55 // loop_body
          %s440 = smul.addr %s432, 4
          %s441 = scalar_lea.vmem [#allocation2], %s440
          %v442 = vld [vmem:[%s441] sm:$0xf]
          %vm443 = vcmask 64512
          %v445 = vsel %vm443, %v429, 0
          %v448 = vsel %vm443, %v442, 0
          %450 = vmatpush.bf16.xpose.msra.mxu0 0
          %451 = vmatpush.bf16.xpose.msra.mxu0 0
          %452 = vmatpush.bf16.xpose.msra.mxu0 0
          %453 = vmatpush.bf16.xpose.msra.mxu0 0
          %454 = vmatpush.bf16.xpose.msra.mxu0 0
          %455 = vmatpush.bf16.xpose.msra.mxu0 0
          %456 = vmatpush.bf16.xpose.msra.mxu0 0
          %457 = vmatpush.bf16.xpose.msra.mxu0 %v448
          %458 = vmatmul.bf16.gmra.mxu0 %v445
          %v459 = vpop.f32.mrf.mxu0
          %v460 = vadd.f32 0.0, %v459
          %v461 = vpop.f32.mrf.mxu0
          %462 = vdwg.mxu0
          %p463 = scmp.lt.s32.totalorder %s432, %s28
          %s464 = scalar_select %p463, 1, 0
          %v465 = vstv %s464
          %vm466 = vcmp.eq.s32.totalorder %v465, 1
          %vm467 = vmor %vm466, %vm428
          %v468 = vsel %vm467, %v460, -1e+30
          %v469 = vsel %vm443, %v468, -inf
          %470 = vmax.xlane.f32.xlu0 %v469
          %v471 = vpop.xlane.xlu0 %470
          %v472 = vmax.f32 %v437, %v471
          %v473 = vsub.f32 %v437, %v472
          %v474 = vmul.f32 %v473, 1.442695
          %v475 = vpow.pop %v474
          %v476 = vsub.f32 %v468, %v472
          %v477 = vmul.f32 %v476, 1.442695
          %v478 = vpow.pop %v477
          %v479 = vmul.f32 %v475, %v438
          %v480 = vsel %vm443, %v478, 0.0
          %481 = vadd.xlane.f32.xlu0 %v480
          %v482 = vpop.xlane.xlu0 %481
          %v483 = vadd.f32 %v479, %v482
          %v484 = vmul.f32 %v475, %v439
          %v485 = vpack.c.bf16 %v478, %v478
          %v487 = vunpack.c.l.b16 %v442
          %v488 = vpack.c.b16 %v487, %v487
          %489 = vrot.lane.b32.xlu0 %v488, 96
          %v490 = vpop.permute.xlu0 %489
          %v492 = vsel %vm443, %v485, 0
          %vm494 = vcmask 1043456
          %v496 = vsel %vm494, %v490, 0
          %498 = vmatpush.bf16.msra.mxu0 0
          %499 = vmatpush.bf16.msra.mxu0 0
          %500 = vmatpush.bf16.msra.mxu0 0
          %501 = vmatpush.bf16.msra.mxu0 0
          %502 = vmatpush.bf16.msra.mxu0 0
          %503 = vmatpush.bf16.msra.mxu0 0
          %504 = vmatpush.bf16.msra.mxu0 0
          %505 = vmatpush.bf16.msra.mxu0 %v496
          %506 = vmatmul.bf16.gmra.mxu0 %v492
          %v507 = vpop.f32.mrf.mxu0
          %v508 = vadd.f32 0.0, %v507
          %v509 = vpop.f32.mrf.mxu0
          %510 = vdwg.mxu0
          %v511 = vadd.f32 %v484, %v508
        $region61: #{tpu_custom_call.1} parent=55 // loop_footer
          %s434 = sadd.s32 %s432, 1
        $region62: #{tpu_custom_call.1} parent=55 // loop_footer_branch
          %431 = sbr.rel target = $region58
        $region63: #{tpu_custom_call.1} parent=55 // loop_exit
          _
        %v512 = vrcp.pop %v438
        %v513 = vmul.f32 %v439, %v512
        %v514 = vpack.c.bf16 %v513, %v513
        %vm515 = vcmask 60416
        %516 = vst.msk [vmem:[#allocation3] sm:$0xf] %vm515, %v514
        // While loop
        $region64: #{tpu_custom_call.1} parent=55 // loop_pre_header
          _
        $region65: #{tpu_custom_call.1} parent=55 // loop_header
          %s518 = sphi 0, %s520
          %p519 = scmp.ge.s32.totalorder %s518, %s430
          %v523 = vphi -inf, %v566
          %v524 = vphi 0.0, %v577
          %v525 = vphi 0.0, %v602
        $region66: #{tpu_custom_call.1} parent=55 // loop_header_branch
          %522 = sbr.rel (%p519) target = $region70
        $region67: #{tpu_custom_call.1} parent=55 // loop_body
          %s526 = smul.addr %s518, 4
          %s527 = scalar_lea.vmem [#allocation2], %s526
          %v528 = vld [vmem:[%s527] sm:$0xf]
          %530 = vrot.lane.b32.xlu0 %v429, 120
          %v531 = vpop.permute.xlu0 %530
          %v533 = vunpack.c.l.b16 %v528
          %v534 = vpack.c.b16 %v533, %v533
          %535 = vrot.lane.b32.xlu0 %v534, 120
          %v536 = vpop.permute.xlu0 %535
          %vm537 = vcmask 64512
          %v539 = vsel %vm537, %v531, 0
          %v542 = vsel %vm537, %v536, 0
          %544 = vmatpush.bf16.xpose.msra.mxu0 0
          %545 = vmatpush.bf16.xpose.msra.mxu0 0
          %546 = vmatpush.bf16.xpose.msra.mxu0 0
          %547 = vmatpush.bf16.xpose.msra.mxu0 0
          %548 = vmatpush.bf16.xpose.msra.mxu0 0
          %549 = vmatpush.bf16.xpose.msra.mxu0 0
          %550 = vmatpush.bf16.xpose.msra.mxu0 0
          %551 = vmatpush.bf16.xpose.msra.mxu0 %v542
          %552 = vmatmul.bf16.gmra.mxu0 %v539
          %v553 = vpop.f32.mrf.mxu0
          %v554 = vadd.f32 0.0, %v553
          %v555 = vpop.f32.mrf.mxu0
          %556 = vdwg.mxu0
          %p557 = scmp.lt.s32.totalorder %s518, %s28
          %s558 = scalar_select %p557, 1, 0
          %v559 = vstv %s558
          %vm560 = vcmp.eq.s32.totalorder %v559, 1
          %vm561 = vmor %vm560, %vm428
          %v562 = vsel %vm561, %v554, -1e+30
          %v563 = vsel %vm537, %v562, -inf
          %564 = vmax.xlane.f32.xlu0 %v563
          %v565 = vpop.xlane.xlu0 %564
          %v566 = vmax.f32 %v523, %v565
          %v567 = vsub.f32 %v523, %v566
          %v568 = vmul.f32 %v567, 1.442695
          %v569 = vpow.pop %v568
          %v570 = vsub.f32 %v562, %v566
          %v571 = vmul.f32 %v570, 1.442695
          %v572 = vpow.pop %v571
          %v573 = vmul.f32 %v569, %v524
          %v574 = vsel %vm537, %v572, 0.0
          %575 = vadd.xlane.f32.xlu0 %v574
          %v576 = vpop.xlane.xlu0 %575
          %v577 = vadd.f32 %v573, %v576
          %v578 = vmul.f32 %v569, %v525
          %v579 = vpack.c.bf16 %v572, %v572
          %580 = vrot.lane.b32.xlu0 %v534, 88
          %v581 = vpop.permute.xlu0 %580
          %v583 = vsel %vm537, %v579, 0
          %vm585 = vcmask 1043456
          %v587 = vsel %vm585, %v581, 0
          %589 = vmatpush.bf16.msra.mxu0 0
          %590 = vmatpush.bf16.msra.mxu0 0
          %591 = vmatpush.bf16.msra.mxu0 0
          %592 = vmatpush.bf16.msra.mxu0 0
          %593 = vmatpush.bf16.msra.mxu0 0
          %594 = vmatpush.bf16.msra.mxu0 0
          %595 = vmatpush.bf16.msra.mxu0 0
          %596 = vmatpush.bf16.msra.mxu0 %v587
          %597 = vmatmul.bf16.gmra.mxu0 %v583
          %v598 = vpop.f32.mrf.mxu0
          %v599 = vadd.f32 0.0, %v598
          %v600 = vpop.f32.mrf.mxu0
          %601 = vdwg.mxu0
          %v602 = vadd.f32 %v578, %v599
        $region68: #{tpu_custom_call.1} parent=55 // loop_footer
          %s520 = sadd.s32 %s518, 1
        $region69: #{tpu_custom_call.1} parent=55 // loop_footer_branch
          %517 = sbr.rel target = $region65
        $region70: #{tpu_custom_call.1} parent=55 // loop_exit
          _
        %v603 = vrcp.pop %v524
        %v604 = vmul.f32 %v525, %v603
        %v605 = vpack.c.bf16 %v604, %v604
        %607 = vrot.lane.b32.xlu0 %v605, 8
        %v608 = vpop.permute.xlu0 %607
        %vm610 = vcmask 126016
        %611 = vst.msk [vmem:[#allocation3] sm:$0xf] %vm610, %v608
        // While loop
        $region71: #{tpu_custom_call.1} parent=55 // loop_pre_header
          _
        $region72: #{tpu_custom_call.1} parent=55 // loop_header
          %s613 = sphi 0, %s615
          %p614 = scmp.ge.s32.totalorder %s613, %s430
          %v618 = vphi -inf, %v661
          %v619 = vphi 0.0, %v672
          %v620 = vphi 0.0, %v697
        $region73: #{tpu_custom_call.1} parent=55 // loop_header_branch
          %617 = sbr.rel (%p614) target = $region77
        $region74: #{tpu_custom_call.1} parent=55 // loop_body
          %s621 = smul.addr %s613, 4
          %s622 = scalar_lea.vmem [#allocation2], %s621
          %v623 = vld [vmem:[%s622] sm:$0xf]
          %625 = vrot.lane.b32.xlu0 %v429, 112
          %v626 = vpop.permute.xlu0 %625
          %v628 = vunpack.c.l.b16 %v623
          %v629 = vpack.c.b16 %v628, %v628
          %630 = vrot.lane.b32.xlu0 %v629, 112
          %v631 = vpop.permute.xlu0 %630
          %vm632 = vcmask 64512
          %v634 = vsel %vm632, %v626, 0
          %v637 = vsel %vm632, %v631, 0
          %639 = vmatpush.bf16.xpose.msra.mxu0 0
          %640 = vmatpush.bf16.xpose.msra.mxu0 0
          %641 = vmatpush.bf16.xpose.msra.mxu0 0
          %642 = vmatpush.bf16.xpose.msra.mxu0 0
          %643 = vmatpush.bf16.xpose.msra.mxu0 0
          %644 = vmatpush.bf16.xpose.msra.mxu0 0
          %645 = vmatpush.bf16.xpose.msra.mxu0 0
          %646 = vmatpush.bf16.xpose.msra.mxu0 %v637
          %647 = vmatmul.bf16.gmra.mxu0 %v634
          %v648 = vpop.f32.mrf.mxu0
          %v649 = vadd.f32 0.0, %v648
          %v650 = vpop.f32.mrf.mxu0
          %651 = vdwg.mxu0
          %p652 = scmp.lt.s32.totalorder %s613, %s28
          %s653 = scalar_select %p652, 1, 0
          %v654 = vstv %s653
          %vm655 = vcmp.eq.s32.totalorder %v654, 1
          %vm656 = vmor %vm655, %vm428
          %v657 = vsel %vm656, %v649, -1e+30
          %v658 = vsel %vm632, %v657, -inf
          %659 = vmax.xlane.f32.xlu0 %v658
          %v660 = vpop.xlane.xlu0 %659
          %v661 = vmax.f32 %v618, %v660
          %v662 = vsub.f32 %v618, %v661
          %v663 = vmul.f32 %v662, 1.442695
          %v664 = vpow.pop %v663
          %v665 = vsub.f32 %v657, %v661
          %v666 = vmul.f32 %v665, 1.442695
          %v667 = vpow.pop %v666
          %v668 = vmul.f32 %v664, %v619
          %v669 = vsel %vm632, %v667, 0.0
          %670 = vadd.xlane.f32.xlu0 %v669
          %v671 = vpop.xlane.xlu0 %670
          %v672 = vadd.f32 %v668, %v671
          %v673 = vmul.f32 %v664, %v620
          %v674 = vpack.c.bf16 %v667, %v667
          %675 = vrot.lane.b32.xlu0 %v629, 80
          %v676 = vpop.permute.xlu0 %675
          %v678 = vsel %vm632, %v674, 0
          %vm680 = vcmask 1043456
          %v682 = vsel %vm680, %v676, 0
          %684 = vmatpush.bf16.msra.mxu0 0
          %685 = vmatpush.bf16.msra.mxu0 0
          %686 = vmatpush.bf16.msra.mxu0 0
          %687 = vmatpush.bf16.msra.mxu0 0
          %688 = vmatpush.bf16.msra.mxu0 0
          %689 = vmatpush.bf16.msra.mxu0 0
          %690 = vmatpush.bf16.msra.mxu0 0
          %691 = vmatpush.bf16.msra.mxu0 %v682
          %692 = vmatmul.bf16.gmra.mxu0 %v678
          %v693 = vpop.f32.mrf.mxu0
          %v694 = vadd.f32 0.0, %v693
          %v695 = vpop.f32.mrf.mxu0
          %696 = vdwg.mxu0
          %v697 = vadd.f32 %v673, %v694
        $region75: #{tpu_custom_call.1} parent=55 // loop_footer
          %s615 = sadd.s32 %s613, 1
        $region76: #{tpu_custom_call.1} parent=55 // loop_footer_branch
          %612 = sbr.rel target = $region72
        $region77: #{tpu_custom_call.1} parent=55 // loop_exit
          _
        %v698 = vrcp.pop %v619
        %v699 = vmul.f32 %v620, %v698
        %v700 = vpack.c.bf16 %v699, %v699
        %702 = vrot.lane.b32.xlu0 %v700, 16
        %v703 = vpop.permute.xlu0 %702
        %vm705 = vcmask 191616
        %706 = vst.msk [vmem:[#allocation3] sm:$0xf] %vm705, %v703
        // While loop
        $region78: #{tpu_custom_call.1} parent=55 // loop_pre_header
          _
        $region79: #{tpu_custom_call.1} parent=55 // loop_header
          %s708 = sphi 0, %s710
          %p709 = scmp.ge.s32.totalorder %s708, %s430
          %v713 = vphi -inf, %v756
          %v714 = vphi 0.0, %v767
          %v715 = vphi 0.0, %v792
        $region80: #{tpu_custom_call.1} parent=55 // loop_header_branch
          %712 = sbr.rel (%p709) target = $region84
        $region81: #{tpu_custom_call.1} parent=55 // loop_body
          %s716 = smul.addr %s708, 4
          %s717 = scalar_lea.vmem [#allocation2], %s716
          %v718 = vld [vmem:[%s717] sm:$0xf]
          %720 = vrot.lane.b32.xlu0 %v429, 104
          %v721 = vpop.permute.xlu0 %720
          %v723 = vunpack.c.l.b16 %v718
          %v724 = vpack.c.b16 %v723, %v723
          %725 = vrot.lane.b32.xlu0 %v724, 104
          %v726 = vpop.permute.xlu0 %725
          %vm727 = vcmask 64512
          %v729 = vsel %vm727, %v721, 0
          %v732 = vsel %vm727, %v726, 0
          %734 = vmatpush.bf16.xpose.msra.mxu0 0
          %735 = vmatpush.bf16.xpose.msra.mxu0 0
          %736 = vmatpush.bf16.xpose.msra.mxu0 0
          %737 = vmatpush.bf16.xpose.msra.mxu0 0
          %738 = vmatpush.bf16.xpose.msra.mxu0 0
          %739 = vmatpush.bf16.xpose.msra.mxu0 0
          %740 = vmatpush.bf16.xpose.msra.mxu0 0
          %741 = vmatpush.bf16.xpose.msra.mxu0 %v732
          %742 = vmatmul.bf16.gmra.mxu0 %v729
          %v743 = vpop.f32.mrf.mxu0
          %v744 = vadd.f32 0.0, %v743
          %v745 = vpop.f32.mrf.mxu0
          %746 = vdwg.mxu0
          %p747 = scmp.lt.s32.totalorder %s708, %s28
          %s748 = scalar_select %p747, 1, 0
          %v749 = vstv %s748
          %vm750 = vcmp.eq.s32.totalorder %v749, 1
          %vm751 = vmor %vm750, %vm428
          %v752 = vsel %vm751, %v744, -1e+30
          %v753 = vsel %vm727, %v752, -inf
          %754 = vmax.xlane.f32.xlu0 %v753
          %v755 = vpop.xlane.xlu0 %754
          %v756 = vmax.f32 %v713, %v755
          %v757 = vsub.f32 %v713, %v756
          %v758 = vmul.f32 %v757, 1.442695
          %v759 = vpow.pop %v758
          %v760 = vsub.f32 %v752, %v756
          %v761 = vmul.f32 %v760, 1.442695
          %v762 = vpow.pop %v761
          %v763 = vmul.f32 %v759, %v714
          %v764 = vsel %vm727, %v762, 0.0
          %765 = vadd.xlane.f32.xlu0 %v764
          %v766 = vpop.xlane.xlu0 %765
          %v767 = vadd.f32 %v763, %v766
          %v768 = vmul.f32 %v759, %v715
          %v769 = vpack.c.bf16 %v762, %v762
          %770 = vrot.lane.b32.xlu0 %v724, 72
          %v771 = vpop.permute.xlu0 %770
          %v773 = vsel %vm727, %v769, 0
          %vm775 = vcmask 1043456
          %v777 = vsel %vm775, %v771, 0
          %779 = vmatpush.bf16.msra.mxu0 0
          %780 = vmatpush.bf16.msra.mxu0 0
          %781 = vmatpush.bf16.msra.mxu0 0
          %782 = vmatpush.bf16.msra.mxu0 0
          %783 = vmatpush.bf16.msra.mxu0 0
          %784 = vmatpush.bf16.msra.mxu0 0
          %785 = vmatpush.bf16.msra.mxu0 0
          %786 = vmatpush.bf16.msra.mxu0 %v777
          %787 = vmatmul.bf16.gmra.mxu0 %v773
          %v788 = vpop.f32.mrf.mxu0
          %v789 = vadd.f32 0.0, %v788
          %v790 = vpop.f32.mrf.mxu0
          %791 = vdwg.mxu0
          %v792 = vadd.f32 %v768, %v789
        $region82: #{tpu_custom_call.1} parent=55 // loop_footer
          %s710 = sadd.s32 %s708, 1
        $region83: #{tpu_custom_call.1} parent=55 // loop_footer_branch
          %707 = sbr.rel target = $region79
        $region84: #{tpu_custom_call.1} parent=55 // loop_exit
          _
        %v793 = vrcp.pop %v714
        %v794 = vmul.f32 %v715, %v793
        %v795 = vpack.c.bf16 %v794, %v794
        %797 = vrot.lane.b32.xlu0 %v795, 24
        %v798 = vpop.permute.xlu0 %797
        %vm800 = vcmask 257216
        %801 = vst.msk [vmem:[#allocation3] sm:$0xf] %vm800, %v798
        %v802 = vld [vmem:[#allocation3] sm:$0xf]
        %v803 = vld [vmem:[%s3] sm:$0xf]
        %v804 = vld [vmem:[%s3 + $0x4] sm:$0xf]
        %v805 = vld [vmem:[%s3 + $0x8] sm:$0xf]
        %v806 = vld [vmem:[%s3 + $0xc] sm:$0xf]
        %v807 = vld [vmem:[%s4] sm:$0x1]
        %v809 = vperm.slane %v807, 0
        %v815 = vunpack.c.l.b16 %v803
        %v816 = vunpack.c.l.b16 %v804
        %v817 = vunpack.c.l.b16 %v805
        %v818 = vunpack.c.l.b16 %v806
        %v819 = vpack.c.b16 %v816, %v815
        %v820 = vpack.c.b16 %v818, %v817
        %v824 = vsel %vm372, %v802, 0
        %826 = vmatpush.bf16.msra.mxu0 0
        %827 = vmatpush.bf16.msra.mxu0 0
        %828 = vmatpush.bf16.msra.mxu0 0
        %829 = vmatpush.bf16.msra.mxu0 0
        %830 = vmatpush.bf16.msra.mxu0 0
        %831 = vmatpush.bf16.msra.mxu0 0
        %832 = vmatpush.bf16.msra.mxu0 %v820
        %833 = vmatpush.bf16.msra.mxu0 %v819
        %834 = vmatmul.bf16.gmra.mxu0 %v824
        %v835 = vpop.f32.mrf.mxu0
        %v836 = vadd.f32 %v809, %v835
        %v837 = vpop.f32.mrf.mxu0
        %838 = vdwg.mxu0
        %v839 = vadd.f32 %v354, %v836
        %v840 = vpack.c.bf16 %v839, %v839
        %v841 = vld [vmem:[%s5] sm:$0xf]
        %v842 = vld [vmem:[%s5 + $0x4] sm:$0xf]
        %v843 = vld [vmem:[%s5 + $0x8] sm:$0xf]
        %v844 = vld [vmem:[%s5 + $0xc] sm:$0xf]
        %v845 = vld [vmem:[%s6] sm:$0x1]
        %v847 = vperm.slane %v845, 0
        %v853 = vunpack.c.l.b16 %v841
        %v854 = vunpack.c.l.b16 %v842
        %v855 = vunpack.c.l.b16 %v843
        %v856 = vunpack.c.l.b16 %v844
        %v857 = vpack.c.b16 %v854, %v853
        %v858 = vpack.c.b16 %v856, %v855
        %v862 = vsel %vm372, %v840, 0
        %864 = vmatpush.bf16.msra.mxu0 0
        %865 = vmatpush.bf16.msra.mxu0 0
        %866 = vmatpush.bf16.msra.mxu0 0
        %867 = vmatpush.bf16.msra.mxu0 0
        %868 = vmatpush.bf16.msra.mxu0 0
        %869 = vmatpush.bf16.msra.mxu0 0
        %870 = vmatpush.bf16.msra.mxu0 %v858
        %871 = vmatpush.bf16.msra.mxu0 %v857
        %872 = vmatmul.bf16.gmra.mxu0 %v862
        %v873 = vpop.f32.mrf.mxu0
        %v874 = vadd.f32 %v847, %v873
        %v875 = vpop.f32.mrf.mxu0
        %876 = vdwg.mxu0
        %v877 = vmax.f32 %v874, 0.0
        %v878 = vpack.c.bf16 %v877, %v877
        %v879 = vld [vmem:[%s7] sm:$0xf]
        %v880 = vld [vmem:[%s7 + $0x4] sm:$0xf]
        %v881 = vld [vmem:[%s7 + $0x8] sm:$0xf]
        %v882 = vld [vmem:[%s7 + $0xc] sm:$0xf]
        %v883 = vld [vmem:[%s7 + $0x10] sm:$0xf]
        %v884 = vld [vmem:[%s7 + $0x14] sm:$0xf]
        %v885 = vld [vmem:[%s7 + $0x18] sm:$0xf]
        %v886 = vld [vmem:[%s7 + $0x1c] sm:$0xf]
        %v887 = vld [vmem:[%s7 + $0x20] sm:$0xf]
        %v888 = vld [vmem:[%s7 + $0x24] sm:$0xf]
        %v889 = vld [vmem:[%s7 + $0x28] sm:$0xf]
        %v890 = vld [vmem:[%s7 + $0x2c] sm:$0xf]
        %v891 = vld [vmem:[%s7 + $0x30] sm:$0xf]
        %v892 = vld [vmem:[%s7 + $0x34] sm:$0xf]
        %v893 = vld [vmem:[%s7 + $0x38] sm:$0xf]
        %v894 = vld [vmem:[%s7 + $0x3c] sm:$0xf]
        %v895 = vld [vmem:[%s8] sm:$0x1]
        %v897 = vperm.slane %v895, 0
        %v915 = vunpack.c.l.b16 %v879
        %v916 = vunpack.c.l.b16 %v880
        %v917 = vunpack.c.l.b16 %v881
        %v918 = vunpack.c.l.b16 %v882
        %v919 = vunpack.c.l.b16 %v883
        %v920 = vunpack.c.l.b16 %v884
        %v921 = vunpack.c.l.b16 %v885
        %v922 = vunpack.c.l.b16 %v886
        %v923 = vunpack.c.l.b16 %v887
        %v924 = vunpack.c.l.b16 %v888
        %v925 = vunpack.c.l.b16 %v889
        %v926 = vunpack.c.l.b16 %v890
        %v927 = vunpack.c.l.b16 %v891
        %v928 = vunpack.c.l.b16 %v892
        %v929 = vunpack.c.l.b16 %v893
        %v930 = vunpack.c.l.b16 %v894
        %v931 = vpack.c.b16 %v916, %v915
        %v932 = vpack.c.b16 %v918, %v917
        %v933 = vpack.c.b16 %v920, %v919
        %v934 = vpack.c.b16 %v922, %v921
        %v935 = vpack.c.b16 %v924, %v923
        %v936 = vpack.c.b16 %v926, %v925
        %v937 = vpack.c.b16 %v928, %v927
        %v938 = vpack.c.b16 %v930, %v929
        %947 = vmatpush.bf16.msra.mxu0 %v938
        %948 = vmatpush.bf16.msra.mxu0 %v937
        %949 = vmatpush.bf16.msra.mxu0 %v936
        %950 = vmatpush.bf16.msra.mxu0 %v935
        %951 = vmatpush.bf16.msra.mxu0 %v934
        %952 = vmatpush.bf16.msra.mxu0 %v933
        %953 = vmatpush.bf16.msra.mxu0 %v932
        %954 = vmatpush.bf16.msra.mxu0 %v931
        %955 = vmatmul.bf16.gmra.mxu0 %v878
        %v956 = vpop.f32.mrf.mxu0
        %v957 = vadd.f32 %v897, %v956
        %v958 = vpop.f32.mrf.mxu0
        %959 = vdwg.mxu0
        %v960 = vadd.f32 %v839, %v957
        %961 = vst.msk [vmem:[%s345] sm:$0xff] %vm372, %v960
        %s962 = sand.u32 %s241, 1
        %s963 = scalar_lea.sflag [#allocation5], %s962
        %s964 = sand.u32 %s241, 1
        %s965 = smul.addr %s964, 8
        %s966 = scalar_lea.vmem [#allocation4], %s965
        // Predicated region
        $region85: #{tpu_custom_call.1} parent=55 // pred_check
          %p967 = pneg %p251
        $region86: #{tpu_custom_call.1} parent=55 // pred_check_branch
          %969 = sbr.rel (%p967) target = $region88
        $region87: #{tpu_custom_call.1} parent=55 // pred_region
          %971 = vsyncadd %s963, 0
          %s972 = sadd.s32 %s28, %s27
          %s973 = smul.addr %s972, 8
          %s974 = scalar_lea.hbm %s9, %s973
          %s976 = sshll.u32 %s966, 4
          %s977 = int_to_ptr.vmem [resolvable:$true] %s976
          %s978 = sshll.u32 %s974, 4
          %s979 = int_to_ptr.hbm [resolvable:$true] %s978
          %981 = dma.vmem_to_hbm [thread:$0]  %s977, 128, %s979, %s963
        $region88: #{tpu_custom_call.1} parent=55 // pred_fallthru
          _
      $region56: #{tpu_custom_call.1} parent=5 // pred_fallthru
        _
      %p982 = scmp.le.s32.totalorder 2, %s18
      // Predicated region
      $region89: #{tpu_custom_call.1} parent=5 // pred_check
        %p983 = pneg %p982
      $region90: #{tpu_custom_call.1} parent=5 // pred_check_branch
        %985 = sbr.rel (%p983) target = $region92
      $region91: #{tpu_custom_call.1} parent=5 // pred_region
        %s986 = ssub.s32 %s18, 2
        // Predicated region
        $region93: #{tpu_custom_call.1} parent=91 // pred_check
          %p987 = pneg %p257
        $region94: #{tpu_custom_call.1} parent=91 // pred_check_branch
          %989 = sbr.rel (%p987) target = $region96
        $region95: #{tpu_custom_call.1} parent=91 // pred_region
          %s990 = sand.u32 %s242, 1
          %s991 = scalar_lea.sflag [#allocation5], %s990
          %s992 = sand.u32 %s242, 1
          %s993 = smul.addr %s992, 8
          %s994 = scalar_lea.vmem [#allocation4], %s993
          %996 = dma.done %s991, 128
        $region96: #{tpu_custom_call.1} parent=91 // pred_fallthru
          _
      $region92: #{tpu_custom_call.1} parent=5 // pred_fallthru
        _
    $region6: #{tpu_custom_call.1} parent=1 // loop_footer
      %s22 = sadd.s32 1, %s18
    $region7: #{tpu_custom_call.1} parent=1 // loop_footer_branch
      %17 = sbr.rel target = $region3
    $region8: #{tpu_custom_call.1} parent=1 // loop_exit
      _
    %997 = vsyncpa [#allocation5], 1
    %s998 = scalar_lea.sflag [#allocation5], 1
    %999 = vsyncpa %s998, 1

</llo_original>
